<compile_context>
chip_gen: v6e
topology: v6e:2x2x1
jax: 0.10.0
libtpu: 0.0.40
codegen_flags: <defaults>
</compile_context>

<pallas_src>
import jax
import jax.numpy as jnp
from jax import lax
from jax.experimental import pallas as pl
from jax.experimental.pallas import tpu as pltpu

HIDDEN_DIM = 32
INPUT_DIM = 5
NUM_LAYERS = 2
OUTPUT_DIM = 1
B_TILE = 8            # sublane-aligned batch tile (multiple of 8)


def lstm_kernel(x_ref,        # (T, B_TILE, D) time-major batch tile
                wih0_ref,     # (D, 4H)  gate cols [i,f,o,g]; i/f/o pre-scaled 0.5
                b0_ref,       # (1, 4H)  b_ih0 + b_hh0, same reorder/scaling
                w0big_ref,    # (H, 8H)  [whh0 | wih1], same reorder/scaling
                whh1_ref,     # (H, 4H)
                b1_ref,       # (1, 4H)
                gscale_ref,   # (1, 4H)  0.5 on i/f/o lanes, 1.0 on g lanes
                goff_ref,     # (1, 4H)  0.5 on i/f/o lanes, 0.0 on g lanes
                wfc_ref,      # (1, H)
                bfc_ref,      # (1, 1)
                out_ref):     # (B_TILE, 1)
    H = HIDDEN_DIM
    T, Bt, _ = x_ref.shape
    G = 4 * H

    wih0 = wih0_ref[...]
    w0big = w0big_ref[...]
    whh1 = whh1_ref[...]
    # hoisted broadcasts (JAX does not CSE broadcast_in_dim inside the loop)
    b0b = jnp.broadcast_to(b0_ref[...], (Bt, G))
    b1b = jnp.broadcast_to(b1_ref[...], (Bt, G))
    gs = jnp.broadcast_to(gscale_ref[...], (Bt, G))
    go = jnp.broadcast_to(goff_ref[...], (Bt, G))

    # Hoisted layer-0 input projections (bias folded).  These are independent
    # of the recurrence, so the T small MXU pushes pipeline ahead of / under it.
    xproj = [jnp.dot(x_ref[t], wih0, preferred_element_type=jnp.float32) + b0b
             for t in range(T)]

    def gate_act(pre):
        # One EUP push per gate set: i/f/o pre-activations arrive pre-scaled by
        # 0.5, so sigmoid(x) = 0.5 + 0.5*tanh(x/2) and tanh(g) both come out of
        # a single tanh over the 4H-lane vreg plus one fused scale/offset.
        th = jnp.tanh(pre)
        act = th * gs + go
        return (act[:, 0:H], act[:, H:2 * H],
                act[:, 2 * H:3 * H], act[:, 3 * H:4 * H])

    # Recurrent state lives in vregs across the fully unrolled time loop.
    # TODO(synk): for T beyond ~16-32, switch to lax.fori_loop(unroll=2..4) and
    # spill xproj to a VMEM scratch to bound live ranges / instruction stream.
    c0 = c1 = h1 = None
    hh0c = None       # h0_{t-1} @ whh0              (layer-0 recurrent term)
    hh1c = None       # h1_{t-1} @ whh1 + b1         (layer-1 recurrent term)

    for t in range(T):
        # ---- layer 0, step t ----
        gates0 = xproj[t] if t == 0 else xproj[t] + hh0c
        i0, f0, o0, g0 = gate_act(gates0)
        c0 = i0 * g0 if t == 0 else f0 * c0 + i0 * g0
        h0 = o0 * jnp.tanh(c0)

        # Single critical-path MXU push: [hh0 for step t+1 | ih1 for step t].
        big = jnp.dot(h0, w0big, preferred_element_type=jnp.float32)  # (Bt, 8H)
        if t + 1 < T:
            hh0c = big[:, :G]

        # ---- layer 1, step t ----
        gates1 = big[:, G:] + (b1b if t == 0 else hh1c)
        i1, f1, o1, g1 = gate_act(gates1)
        c1 = i1 * g1 if t == 0 else f1 * c1 + i1 * g1
        h1 = o1 * jnp.tanh(c1)

        if t + 1 < T:
            # Off the critical path: only needed after step t+1's layer-0 cell.
            hh1c = jnp.dot(h1, whh1, preferred_element_type=jnp.float32) + b1b

    # fc(out[:, -1, :]): VPU multiply + lane reduce (avoids a 1-column matmul).
    out_ref[...] = (jnp.sum(h1 * wfc_ref[...], axis=-1, keepdims=True)
                    + bfc_ref[...])


def _prep_gate_cols(w):
    """Columns in PyTorch gate order [i, f, g, o] (each H wide) -> [i, f, o, g],
    with the i/f/o columns scaled by 0.5 (sigmoid-via-tanh trick)."""
    H = HIDDEN_DIM
    i = w[:, 0 * H:1 * H]
    f = w[:, 1 * H:2 * H]
    g = w[:, 2 * H:3 * H]
    o = w[:, 3 * H:4 * H]
    return jnp.concatenate([0.5 * i, 0.5 * f, 0.5 * o, g], axis=1)


def init_params(key):
    """Deterministic PyTorch-style init: U(-1/sqrt(H), 1/sqrt(H))."""
    k = 1.0 / jnp.sqrt(jnp.float32(HIDDEN_DIM))
    keys = jax.random.split(key, 10)

    def u(kk, shape):
        return jax.random.uniform(kk, shape, jnp.float32, -k, k)

    return dict(
        # layer 0
        w_ih0=u(keys[0], (4 * HIDDEN_DIM, INPUT_DIM)),
        w_hh0=u(keys[1], (4 * HIDDEN_DIM, HIDDEN_DIM)),
        b_ih0=u(keys[2], (4 * HIDDEN_DIM,)),
        b_hh0=u(keys[3], (4 * HIDDEN_DIM,)),
        # layer 1
        w_ih1=u(keys[4], (4 * HIDDEN_DIM, HIDDEN_DIM)),
        w_hh1=u(keys[5], (4 * HIDDEN_DIM, HIDDEN_DIM)),
        b_ih1=u(keys[6], (4 * HIDDEN_DIM,)),
        b_hh1=u(keys[7], (4 * HIDDEN_DIM,)),
        # fc
        w_fc=u(keys[8], (OUTPUT_DIM, HIDDEN_DIM)),
        b_fc=u(keys[9], (OUTPUT_DIM,)),
    )


def lstm_forward(x, params):
    """x: (B, T, INPUT_DIM) float32  ->  (B, OUTPUT_DIM) float32."""
    B, T, D = x.shape
    assert D == INPUT_DIM
    H = HIDDEN_DIM

    # Pad batch to a multiple of the sublane-aligned tile; padded rows ride
    # along for free and are sliced off at the end.
    B_pad = pl.cdiv(B, B_TILE) * B_TILE
    x_tm = jnp.transpose(x, (1, 0, 2))                                  # (T,B,D)
    if B_pad != B:
        x_tm = jnp.pad(x_tm, ((0, 0), (0, B_pad - B), (0, 0)))

    # Weight prep: transpose to (in, 4H), reorder gate cols to [i,f,o,g], fold
    # biases (b_ih+b_hh), scale i/f/o columns by 0.5 (sigmoid-via-tanh), and
    # fuse [whh0 | wih1] into one (H, 8H) matrix for the per-step MXU push.
    wih0 = _prep_gate_cols(params["w_ih0"].T)                           # (D, 4H)
    whh0 = _prep_gate_cols(params["w_hh0"].T)                           # (H, 4H)
    b0 = _prep_gate_cols((params["b_ih0"] + params["b_hh0"])[None, :])  # (1, 4H)
    wih1 = _prep_gate_cols(params["w_ih1"].T)                           # (H, 4H)
    whh1 = _prep_gate_cols(params["w_hh1"].T)                           # (H, 4H)
    b1 = _prep_gate_cols((params["b_ih1"] + params["b_hh1"])[None, :])  # (1, 4H)
    w0big = jnp.concatenate([whh0, wih1], axis=1)                       # (H, 8H)
    # TODO(synk): on v6e, optionally cast w0big/whh1/wih0 to bf16 (keep f32
    # accumulation) as a VMEM/vreg pressure-relief knob for larger B_TILE / T.

    gscale = jnp.concatenate([jnp.full((1, 3 * H), 0.5, jnp.float32),
                              jnp.ones((1, H), jnp.float32)], axis=1)   # (1, 4H)
    goff = jnp.concatenate([jnp.full((1, 3 * H), 0.5, jnp.float32),
                            jnp.zeros((1, H), jnp.float32)], axis=1)    # (1, 4H)

    wfc = params["w_fc"].reshape(1, H)                                  # (1, H)
    bfc = params["b_fc"].reshape(1, OUTPUT_DIM)                         # (1, 1)

    def full_spec(a):
        nd = a.ndim
        return pl.BlockSpec(a.shape, lambda b, _nd=nd: (0,) * _nd)

    grid = (pl.cdiv(B_pad, B_TILE),)
    out = pl.pallas_call(
        lstm_kernel,
        out_shape=jax.ShapeDtypeStruct((B_pad, OUTPUT_DIM), jnp.float32),
        grid=grid,
        in_specs=[
            pl.BlockSpec((T, B_TILE, D), lambda b: (0, b, 0)),   # batch-tiled x
            full_spec(wih0), full_spec(b0), full_spec(w0big), full_spec(whh1),
            full_spec(b1), full_spec(gscale), full_spec(goff),
            full_spec(wfc), full_spec(bfc),
        ],
        out_specs=pl.BlockSpec((B_TILE, OUTPUT_DIM), lambda b: (b, 0)),
        compiler_params=pltpu.CompilerParams(
            dimension_semantics=("parallel",)),
    )(x_tm, wih0, b0, w0big, whh1, b1, gscale, goff, wfc, bfc)

    return out[:B]


def lstm_reference(x, params):
    """Pure-JAX reference matching torch.nn.LSTM semantics (for checking)."""
    B, T, D = x.shape
    H = HIDDEN_DIM

    def cell(x_t, h, c, w_ih, w_hh, b_ih, b_hh):
        gates = x_t @ w_ih.T + b_ih + h @ w_hh.T + b_hh
        i = jax.nn.sigmoid(gates[:, 0 * H:1 * H])
        f = jax.nn.sigmoid(gates[:, 1 * H:2 * H])
        g = jnp.tanh(gates[:, 2 * H:3 * H])
        o = jax.nn.sigmoid(gates[:, 3 * H:4 * H])
        c_new = f * c + i * g
        h_new = o * jnp.tanh(c_new)
        return h_new, c_new

    def step(carry, x_t):
        h0, c0, h1, c1 = carry
        h0, c0 = cell(x_t, h0, c0, params["w_ih0"], params["w_hh0"],
                      params["b_ih0"], params["b_hh0"])
        h1, c1 = cell(h0, h1, c1, params["w_ih1"], params["w_hh1"],
                      params["b_ih1"], params["b_hh1"])
        return (h0, c0, h1, c1), None

    z = jnp.zeros((B, H), jnp.float32)
    (h0, c0, h1, c1), _ = lax.scan(step, (z, z, z, z),
                                   jnp.transpose(x, (1, 0, 2)))
    return h1 @ params["w_fc"].T + params["b_fc"]


if __name__ == "__main__":
    key = jax.random.PRNGKey(0)
    pkey, xkey = jax.random.split(key)

    params = init_params(pkey)

    B, T = 2, 8
    x = jax.random.normal(xkey, (B, T, INPUT_DIM), jnp.float32)

    out = jax.block_until_ready(lstm_forward(x, params))
    ref = lstm_reference(x, params)

    assert out.shape == (B, OUTPUT_DIM)
    assert jnp.allclose(out, ref, atol=2e-3, rtol=2e-3), (out, ref)

    print("KERNEL_OK")
</pallas_src>

<mosaic_0001>
module attributes {stable_mosaic.version = 11 : i64} {
  func.func @lstm_kernel(%arg0: i32, %arg1: memref<8x8x5xf32, #tpu.memory_space<vmem>>, %arg2: memref<5x128xf32, #tpu.memory_space<vmem>>, %arg3: memref<1x128xf32, #tpu.memory_space<vmem>>, %arg4: memref<32x256xf32, #tpu.memory_space<vmem>>, %arg5: memref<32x128xf32, #tpu.memory_space<vmem>>, %arg6: memref<1x128xf32, #tpu.memory_space<vmem>>, %arg7: memref<1x128xf32, #tpu.memory_space<vmem>>, %arg8: memref<1x128xf32, #tpu.memory_space<vmem>>, %arg9: memref<1x32xf32, #tpu.memory_space<vmem>>, %arg10: memref<1x1xf32, #tpu.memory_space<vmem>>, %arg11: memref<8x1xf32, #tpu.memory_space<vmem>>) attributes {dimension_semantics = [#tpu.dimension_semantics<parallel>], iteration_bounds = array<i64: 1>, scalar_prefetch = 0 : i64, scratch_operands = 0 : i64, tpu.core_type = #tpu.core_type<tc>, window_params = [{transform_indices = @transform_0, window_bounds = array<i64: 8, 8, 5>}, {pipeline_mode = #tpu.pipeline_mode<synchronous>, transform_indices = @transform_1, window_bounds = array<i64: 5, 128>}, {pipeline_mode = #tpu.pipeline_mode<synchronous>, transform_indices = @transform_2, window_bounds = array<i64: 1, 128>}, {pipeline_mode = #tpu.pipeline_mode<synchronous>, transform_indices = @transform_3, window_bounds = array<i64: 32, 256>}, {pipeline_mode = #tpu.pipeline_mode<synchronous>, transform_indices = @transform_4, window_bounds = array<i64: 32, 128>}, {pipeline_mode = #tpu.pipeline_mode<synchronous>, transform_indices = @transform_5, window_bounds = array<i64: 1, 128>}, {pipeline_mode = #tpu.pipeline_mode<synchronous>, transform_indices = @transform_6, window_bounds = array<i64: 1, 128>}, {pipeline_mode = #tpu.pipeline_mode<synchronous>, transform_indices = @transform_7, window_bounds = array<i64: 1, 128>}, {pipeline_mode = #tpu.pipeline_mode<synchronous>, transform_indices = @transform_8, window_bounds = array<i64: 1, 32>}, {pipeline_mode = #tpu.pipeline_mode<synchronous>, transform_indices = @transform_9, window_bounds = array<i64: 1, 1>}, {transform_indices = @transform_10, window_bounds = array<i64: 8, 1>}]} {
    %c0 = arith.constant 0 : index
    %c0_0 = arith.constant 0 : index
    %0 = vector.load %arg2[%c0, %c0_0] : memref<5x128xf32, #tpu.memory_space<vmem>>, vector<5x128xf32>
    %c0_1 = arith.constant 0 : index
    %c0_2 = arith.constant 0 : index
    %1 = vector.load %arg4[%c0_1, %c0_2] : memref<32x256xf32, #tpu.memory_space<vmem>>, vector<32x256xf32>
    %c0_3 = arith.constant 0 : index
    %c0_4 = arith.constant 0 : index
    %2 = vector.load %arg5[%c0_3, %c0_4] : memref<32x128xf32, #tpu.memory_space<vmem>>, vector<32x128xf32>
    %c0_5 = arith.constant 0 : index
    %c0_6 = arith.constant 0 : index
    %3 = vector.load %arg3[%c0_5, %c0_6] : memref<1x128xf32, #tpu.memory_space<vmem>>, vector<1x128xf32>
    %4 = vector.shape_cast %3 : vector<1x128xf32> to vector<1x128xf32>
    %5 = vector.broadcast %4 : vector<1x128xf32> to vector<8x128xf32>
    %c0_7 = arith.constant 0 : index
    %c0_8 = arith.constant 0 : index
    %6 = vector.load %arg6[%c0_7, %c0_8] : memref<1x128xf32, #tpu.memory_space<vmem>>, vector<1x128xf32>
    %7 = vector.shape_cast %6 : vector<1x128xf32> to vector<1x128xf32>
    %8 = vector.broadcast %7 : vector<1x128xf32> to vector<8x128xf32>
    %c0_9 = arith.constant 0 : index
    %c0_10 = arith.constant 0 : index
    %9 = vector.load %arg7[%c0_9, %c0_10] : memref<1x128xf32, #tpu.memory_space<vmem>>, vector<1x128xf32>
    %10 = vector.shape_cast %9 : vector<1x128xf32> to vector<1x128xf32>
    %11 = vector.broadcast %10 : vector<1x128xf32> to vector<8x128xf32>
    %c0_11 = arith.constant 0 : index
    %c0_12 = arith.constant 0 : index
    %12 = vector.load %arg8[%c0_11, %c0_12] : memref<1x128xf32, #tpu.memory_space<vmem>>, vector<1x128xf32>
    %13 = vector.shape_cast %12 : vector<1x128xf32> to vector<1x128xf32>
    %14 = vector.broadcast %13 : vector<1x128xf32> to vector<8x128xf32>
    %c0_13 = arith.constant 0 : index
    %c0_14 = arith.constant 0 : index
    %c0_15 = arith.constant 0 : index
    %15 = vector.load %arg1[%c0_13, %c0_14, %c0_15] : memref<8x8x5xf32, #tpu.memory_space<vmem>>, vector<1x8x5xf32>
    %16 = vector.shape_cast %15 : vector<1x8x5xf32> to vector<8x5xf32>
    %cst = arith.constant dense<0.000000e+00> : vector<8x128xf32>
    %17 = tpu.matmul %16, %0, %cst {dimension_numbers = #tpu.dot_dimension_numbers<[1], [0], [0], [1], [0, 0, 1, 1], [], []>} : vector<8x5xf32>, vector<5x128xf32>, vector<8x128xf32> -> vector<8x128xf32>
    %18 = arith.addf %17, %5 : vector<8x128xf32>
    %c1 = arith.constant 1 : index
    %c0_16 = arith.constant 0 : index
    %c0_17 = arith.constant 0 : index
    %19 = vector.load %arg1[%c1, %c0_16, %c0_17] : memref<8x8x5xf32, #tpu.memory_space<vmem>>, vector<1x8x5xf32>
    %20 = vector.shape_cast %19 : vector<1x8x5xf32> to vector<8x5xf32>
    %cst_18 = arith.constant dense<0.000000e+00> : vector<8x128xf32>
    %21 = tpu.matmul %20, %0, %cst_18 {dimension_numbers = #tpu.dot_dimension_numbers<[1], [0], [0], [1], [0, 0, 1, 1], [], []>} : vector<8x5xf32>, vector<5x128xf32>, vector<8x128xf32> -> vector<8x128xf32>
    %22 = arith.addf %21, %5 : vector<8x128xf32>
    %c2 = arith.constant 2 : index
    %c0_19 = arith.constant 0 : index
    %c0_20 = arith.constant 0 : index
    %23 = vector.load %arg1[%c2, %c0_19, %c0_20] : memref<8x8x5xf32, #tpu.memory_space<vmem>>, vector<1x8x5xf32>
    %24 = vector.shape_cast %23 : vector<1x8x5xf32> to vector<8x5xf32>
    %cst_21 = arith.constant dense<0.000000e+00> : vector<8x128xf32>
    %25 = tpu.matmul %24, %0, %cst_21 {dimension_numbers = #tpu.dot_dimension_numbers<[1], [0], [0], [1], [0, 0, 1, 1], [], []>} : vector<8x5xf32>, vector<5x128xf32>, vector<8x128xf32> -> vector<8x128xf32>
    %26 = arith.addf %25, %5 : vector<8x128xf32>
    %c3 = arith.constant 3 : index
    %c0_22 = arith.constant 0 : index
    %c0_23 = arith.constant 0 : index
    %27 = vector.load %arg1[%c3, %c0_22, %c0_23] : memref<8x8x5xf32, #tpu.memory_space<vmem>>, vector<1x8x5xf32>
    %28 = vector.shape_cast %27 : vector<1x8x5xf32> to vector<8x5xf32>
    %cst_24 = arith.constant dense<0.000000e+00> : vector<8x128xf32>
    %29 = tpu.matmul %28, %0, %cst_24 {dimension_numbers = #tpu.dot_dimension_numbers<[1], [0], [0], [1], [0, 0, 1, 1], [], []>} : vector<8x5xf32>, vector<5x128xf32>, vector<8x128xf32> -> vector<8x128xf32>
    %30 = arith.addf %29, %5 : vector<8x128xf32>
    %c4 = arith.constant 4 : index
    %c0_25 = arith.constant 0 : index
    %c0_26 = arith.constant 0 : index
    %31 = vector.load %arg1[%c4, %c0_25, %c0_26] : memref<8x8x5xf32, #tpu.memory_space<vmem>>, vector<1x8x5xf32>
    %32 = vector.shape_cast %31 : vector<1x8x5xf32> to vector<8x5xf32>
    %cst_27 = arith.constant dense<0.000000e+00> : vector<8x128xf32>
    %33 = tpu.matmul %32, %0, %cst_27 {dimension_numbers = #tpu.dot_dimension_numbers<[1], [0], [0], [1], [0, 0, 1, 1], [], []>} : vector<8x5xf32>, vector<5x128xf32>, vector<8x128xf32> -> vector<8x128xf32>
    %34 = arith.addf %33, %5 : vector<8x128xf32>
    %c5 = arith.constant 5 : index
    %c0_28 = arith.constant 0 : index
    %c0_29 = arith.constant 0 : index
    %35 = vector.load %arg1[%c5, %c0_28, %c0_29] : memref<8x8x5xf32, #tpu.memory_space<vmem>>, vector<1x8x5xf32>
    %36 = vector.shape_cast %35 : vector<1x8x5xf32> to vector<8x5xf32>
    %cst_30 = arith.constant dense<0.000000e+00> : vector<8x128xf32>
    %37 = tpu.matmul %36, %0, %cst_30 {dimension_numbers = #tpu.dot_dimension_numbers<[1], [0], [0], [1], [0, 0, 1, 1], [], []>} : vector<8x5xf32>, vector<5x128xf32>, vector<8x128xf32> -> vector<8x128xf32>
    %38 = arith.addf %37, %5 : vector<8x128xf32>
    %c6 = arith.constant 6 : index
    %c0_31 = arith.constant 0 : index
    %c0_32 = arith.constant 0 : index
    %39 = vector.load %arg1[%c6, %c0_31, %c0_32] : memref<8x8x5xf32, #tpu.memory_space<vmem>>, vector<1x8x5xf32>
    %40 = vector.shape_cast %39 : vector<1x8x5xf32> to vector<8x5xf32>
    %cst_33 = arith.constant dense<0.000000e+00> : vector<8x128xf32>
    %41 = tpu.matmul %40, %0, %cst_33 {dimension_numbers = #tpu.dot_dimension_numbers<[1], [0], [0], [1], [0, 0, 1, 1], [], []>} : vector<8x5xf32>, vector<5x128xf32>, vector<8x128xf32> -> vector<8x128xf32>
    %42 = arith.addf %41, %5 : vector<8x128xf32>
    %c7 = arith.constant 7 : index
    %c0_34 = arith.constant 0 : index
    %c0_35 = arith.constant 0 : index
    %43 = vector.load %arg1[%c7, %c0_34, %c0_35] : memref<8x8x5xf32, #tpu.memory_space<vmem>>, vector<1x8x5xf32>
    %44 = vector.shape_cast %43 : vector<1x8x5xf32> to vector<8x5xf32>
    %cst_36 = arith.constant dense<0.000000e+00> : vector<8x128xf32>
    %45 = tpu.matmul %44, %0, %cst_36 {dimension_numbers = #tpu.dot_dimension_numbers<[1], [0], [0], [1], [0, 0, 1, 1], [], []>} : vector<8x5xf32>, vector<5x128xf32>, vector<8x128xf32> -> vector<8x128xf32>
    %46 = arith.addf %45, %5 : vector<8x128xf32>
    %47 = math.tanh %18 : vector<8x128xf32>
    %48 = arith.mulf %47, %11 : vector<8x128xf32>
    %49 = arith.addf %48, %14 : vector<8x128xf32>
    %50 = vector.extract_strided_slice %49 {offsets = [0, 0], sizes = [8, 32], strides = [1, 1]} : vector<8x128xf32> to vector<8x32xf32>
    %51 = vector.extract_strided_slice %49 {offsets = [0, 64], sizes = [8, 32], strides = [1, 1]} : vector<8x128xf32> to vector<8x32xf32>
    %52 = vector.extract_strided_slice %49 {offsets = [0, 96], sizes = [8, 32], strides = [1, 1]} : vector<8x128xf32> to vector<8x32xf32>
    %53 = arith.mulf %50, %52 : vector<8x32xf32>
    %54 = math.tanh %53 : vector<8x32xf32>
    %55 = arith.mulf %51, %54 : vector<8x32xf32>
    %cst_37 = arith.constant dense<0.000000e+00> : vector<8x256xf32>
    %56 = tpu.matmul %55, %1, %cst_37 {dimension_numbers = #tpu.dot_dimension_numbers<[1], [0], [0], [1], [0, 0, 1, 1], [], []>} : vector<8x32xf32>, vector<32x256xf32>, vector<8x256xf32> -> vector<8x256xf32>
    %57 = vector.extract_strided_slice %56 {offsets = [0, 0], sizes = [8, 128], strides = [1, 1]} : vector<8x256xf32> to vector<8x128xf32>
    %58 = vector.extract_strided_slice %56 {offsets = [0, 128], sizes = [8, 128], strides = [1, 1]} : vector<8x256xf32> to vector<8x128xf32>
    %59 = arith.addf %58, %8 : vector<8x128xf32>
    %60 = math.tanh %59 : vector<8x128xf32>
    %61 = arith.mulf %60, %11 : vector<8x128xf32>
    %62 = arith.addf %61, %14 : vector<8x128xf32>
    %63 = vector.extract_strided_slice %62 {offsets = [0, 0], sizes = [8, 32], strides = [1, 1]} : vector<8x128xf32> to vector<8x32xf32>
    %64 = vector.extract_strided_slice %62 {offsets = [0, 64], sizes = [8, 32], strides = [1, 1]} : vector<8x128xf32> to vector<8x32xf32>
    %65 = vector.extract_strided_slice %62 {offsets = [0, 96], sizes = [8, 32], strides = [1, 1]} : vector<8x128xf32> to vector<8x32xf32>
    %66 = arith.mulf %63, %65 : vector<8x32xf32>
    %67 = math.tanh %66 : vector<8x32xf32>
    %68 = arith.mulf %64, %67 : vector<8x32xf32>
    %cst_38 = arith.constant dense<0.000000e+00> : vector<8x128xf32>
    %69 = tpu.matmul %68, %2, %cst_38 {dimension_numbers = #tpu.dot_dimension_numbers<[1], [0], [0], [1], [0, 0, 1, 1], [], []>} : vector<8x32xf32>, vector<32x128xf32>, vector<8x128xf32> -> vector<8x128xf32>
    %70 = arith.addf %69, %8 : vector<8x128xf32>
    %71 = arith.addf %22, %57 : vector<8x128xf32>
    %72 = math.tanh %71 : vector<8x128xf32>
    %73 = arith.mulf %72, %11 : vector<8x128xf32>
    %74 = arith.addf %73, %14 : vector<8x128xf32>
    %75 = vector.extract_strided_slice %74 {offsets = [0, 0], sizes = [8, 32], strides = [1, 1]} : vector<8x128xf32> to vector<8x32xf32>
    %76 = vector.extract_strided_slice %74 {offsets = [0, 32], sizes = [8, 32], strides = [1, 1]} : vector<8x128xf32> to vector<8x32xf32>
    %77 = vector.extract_strided_slice %74 {offsets = [0, 64], sizes = [8, 32], strides = [1, 1]} : vector<8x128xf32> to vector<8x32xf32>
    %78 = vector.extract_strided_slice %74 {offsets = [0, 96], sizes = [8, 32], strides = [1, 1]} : vector<8x128xf32> to vector<8x32xf32>
    %79 = arith.mulf %76, %53 : vector<8x32xf32>
    %80 = arith.mulf %75, %78 : vector<8x32xf32>
    %81 = arith.addf %79, %80 : vector<8x32xf32>
    %82 = math.tanh %81 : vector<8x32xf32>
    %83 = arith.mulf %77, %82 : vector<8x32xf32>
    %cst_39 = arith.constant dense<0.000000e+00> : vector<8x256xf32>
    %84 = tpu.matmul %83, %1, %cst_39 {dimension_numbers = #tpu.dot_dimension_numbers<[1], [0], [0], [1], [0, 0, 1, 1], [], []>} : vector<8x32xf32>, vector<32x256xf32>, vector<8x256xf32> -> vector<8x256xf32>
    %85 = vector.extract_strided_slice %84 {offsets = [0, 0], sizes = [8, 128], strides = [1, 1]} : vector<8x256xf32> to vector<8x128xf32>
    %86 = vector.extract_strided_slice %84 {offsets = [0, 128], sizes = [8, 128], strides = [1, 1]} : vector<8x256xf32> to vector<8x128xf32>
    %87 = arith.addf %86, %70 : vector<8x128xf32>
    %88 = math.tanh %87 : vector<8x128xf32>
    %89 = arith.mulf %88, %11 : vector<8x128xf32>
    %90 = arith.addf %89, %14 : vector<8x128xf32>
    %91 = vector.extract_strided_slice %90 {offsets = [0, 0], sizes = [8, 32], strides = [1, 1]} : vector<8x128xf32> to vector<8x32xf32>
    %92 = vector.extract_strided_slice %90 {offsets = [0, 32], sizes = [8, 32], strides = [1, 1]} : vector<8x128xf32> to vector<8x32xf32>
    %93 = vector.extract_strided_slice %90 {offsets = [0, 64], sizes = [8, 32], strides = [1, 1]} : vector<8x128xf32> to vector<8x32xf32>
    %94 = vector.extract_strided_slice %90 {offsets = [0, 96], sizes = [8, 32], strides = [1, 1]} : vector<8x128xf32> to vector<8x32xf32>
    %95 = arith.mulf %92, %66 : vector<8x32xf32>
    %96 = arith.mulf %91, %94 : vector<8x32xf32>
    %97 = arith.addf %95, %96 : vector<8x32xf32>
    %98 = math.tanh %97 : vector<8x32xf32>
    %99 = arith.mulf %93, %98 : vector<8x32xf32>
    %cst_40 = arith.constant dense<0.000000e+00> : vector<8x128xf32>
    %100 = tpu.matmul %99, %2, %cst_40 {dimension_numbers = #tpu.dot_dimension_numbers<[1], [0], [0], [1], [0, 0, 1, 1], [], []>} : vector<8x32xf32>, vector<32x128xf32>, vector<8x128xf32> -> vector<8x128xf32>
    %101 = arith.addf %100, %8 : vector<8x128xf32>
    %102 = arith.addf %26, %85 : vector<8x128xf32>
    %103 = math.tanh %102 : vector<8x128xf32>
    %104 = arith.mulf %103, %11 : vector<8x128xf32>
    %105 = arith.addf %104, %14 : vector<8x128xf32>
    %106 = vector.extract_strided_slice %105 {offsets = [0, 0], sizes = [8, 32], strides = [1, 1]} : vector<8x128xf32> to vector<8x32xf32>
    %107 = vector.extract_strided_slice %105 {offsets = [0, 32], sizes = [8, 32], strides = [1, 1]} : vector<8x128xf32> to vector<8x32xf32>
    %108 = vector.extract_strided_slice %105 {offsets = [0, 64], sizes = [8, 32], strides = [1, 1]} : vector<8x128xf32> to vector<8x32xf32>
    %109 = vector.extract_strided_slice %105 {offsets = [0, 96], sizes = [8, 32], strides = [1, 1]} : vector<8x128xf32> to vector<8x32xf32>
    %110 = arith.mulf %107, %81 : vector<8x32xf32>
    %111 = arith.mulf %106, %109 : vector<8x32xf32>
    %112 = arith.addf %110, %111 : vector<8x32xf32>
    %113 = math.tanh %112 : vector<8x32xf32>
    %114 = arith.mulf %108, %113 : vector<8x32xf32>
    %cst_41 = arith.constant dense<0.000000e+00> : vector<8x256xf32>
    %115 = tpu.matmul %114, %1, %cst_41 {dimension_numbers = #tpu.dot_dimension_numbers<[1], [0], [0], [1], [0, 0, 1, 1], [], []>} : vector<8x32xf32>, vector<32x256xf32>, vector<8x256xf32> -> vector<8x256xf32>
    %116 = vector.extract_strided_slice %115 {offsets = [0, 0], sizes = [8, 128], strides = [1, 1]} : vector<8x256xf32> to vector<8x128xf32>
    %117 = vector.extract_strided_slice %115 {offsets = [0, 128], sizes = [8, 128], strides = [1, 1]} : vector<8x256xf32> to vector<8x128xf32>
    %118 = arith.addf %117, %101 : vector<8x128xf32>
    %119 = math.tanh %118 : vector<8x128xf32>
    %120 = arith.mulf %119, %11 : vector<8x128xf32>
    %121 = arith.addf %120, %14 : vector<8x128xf32>
    %122 = vector.extract_strided_slice %121 {offsets = [0, 0], sizes = [8, 32], strides = [1, 1]} : vector<8x128xf32> to vector<8x32xf32>
    %123 = vector.extract_strided_slice %121 {offsets = [0, 32], sizes = [8, 32], strides = [1, 1]} : vector<8x128xf32> to vector<8x32xf32>
    %124 = vector.extract_strided_slice %121 {offsets = [0, 64], sizes = [8, 32], strides = [1, 1]} : vector<8x128xf32> to vector<8x32xf32>
    %125 = vector.extract_strided_slice %121 {offsets = [0, 96], sizes = [8, 32], strides = [1, 1]} : vector<8x128xf32> to vector<8x32xf32>
    %126 = arith.mulf %123, %97 : vector<8x32xf32>
    %127 = arith.mulf %122, %125 : vector<8x32xf32>
    %128 = arith.addf %126, %127 : vector<8x32xf32>
    %129 = math.tanh %128 : vector<8x32xf32>
    %130 = arith.mulf %124, %129 : vector<8x32xf32>
    %cst_42 = arith.constant dense<0.000000e+00> : vector<8x128xf32>
    %131 = tpu.matmul %130, %2, %cst_42 {dimension_numbers = #tpu.dot_dimension_numbers<[1], [0], [0], [1], [0, 0, 1, 1], [], []>} : vector<8x32xf32>, vector<32x128xf32>, vector<8x128xf32> -> vector<8x128xf32>
    %132 = arith.addf %131, %8 : vector<8x128xf32>
    %133 = arith.addf %30, %116 : vector<8x128xf32>
    %134 = math.tanh %133 : vector<8x128xf32>
    %135 = arith.mulf %134, %11 : vector<8x128xf32>
    %136 = arith.addf %135, %14 : vector<8x128xf32>
    %137 = vector.extract_strided_slice %136 {offsets = [0, 0], sizes = [8, 32], strides = [1, 1]} : vector<8x128xf32> to vector<8x32xf32>
    %138 = vector.extract_strided_slice %136 {offsets = [0, 32], sizes = [8, 32], strides = [1, 1]} : vector<8x128xf32> to vector<8x32xf32>
    %139 = vector.extract_strided_slice %136 {offsets = [0, 64], sizes = [8, 32], strides = [1, 1]} : vector<8x128xf32> to vector<8x32xf32>
    %140 = vector.extract_strided_slice %136 {offsets = [0, 96], sizes = [8, 32], strides = [1, 1]} : vector<8x128xf32> to vector<8x32xf32>
    %141 = arith.mulf %138, %112 : vector<8x32xf32>
    %142 = arith.mulf %137, %140 : vector<8x32xf32>
    %143 = arith.addf %141, %142 : vector<8x32xf32>
    %144 = math.tanh %143 : vector<8x32xf32>
    %145 = arith.mulf %139, %144 : vector<8x32xf32>
    %cst_43 = arith.constant dense<0.000000e+00> : vector<8x256xf32>
    %146 = tpu.matmul %145, %1, %cst_43 {dimension_numbers = #tpu.dot_dimension_numbers<[1], [0], [0], [1], [0, 0, 1, 1], [], []>} : vector<8x32xf32>, vector<32x256xf32>, vector<8x256xf32> -> vector<8x256xf32>
    %147 = vector.extract_strided_slice %146 {offsets = [0, 0], sizes = [8, 128], strides = [1, 1]} : vector<8x256xf32> to vector<8x128xf32>
    %148 = vector.extract_strided_slice %146 {offsets = [0, 128], sizes = [8, 128], strides = [1, 1]} : vector<8x256xf32> to vector<8x128xf32>
    %149 = arith.addf %148, %132 : vector<8x128xf32>
    %150 = math.tanh %149 : vector<8x128xf32>
    %151 = arith.mulf %150, %11 : vector<8x128xf32>
    %152 = arith.addf %151, %14 : vector<8x128xf32>
    %153 = vector.extract_strided_slice %152 {offsets = [0, 0], sizes = [8, 32], strides = [1, 1]} : vector<8x128xf32> to vector<8x32xf32>
    %154 = vector.extract_strided_slice %152 {offsets = [0, 32], sizes = [8, 32], strides = [1, 1]} : vector<8x128xf32> to vector<8x32xf32>
    %155 = vector.extract_strided_slice %152 {offsets = [0, 64], sizes = [8, 32], strides = [1, 1]} : vector<8x128xf32> to vector<8x32xf32>
    %156 = vector.extract_strided_slice %152 {offsets = [0, 96], sizes = [8, 32], strides = [1, 1]} : vector<8x128xf32> to vector<8x32xf32>
    %157 = arith.mulf %154, %128 : vector<8x32xf32>
    %158 = arith.mulf %153, %156 : vector<8x32xf32>
    %159 = arith.addf %157, %158 : vector<8x32xf32>
    %160 = math.tanh %159 : vector<8x32xf32>
    %161 = arith.mulf %155, %160 : vector<8x32xf32>
    %cst_44 = arith.constant dense<0.000000e+00> : vector<8x128xf32>
    %162 = tpu.matmul %161, %2, %cst_44 {dimension_numbers = #tpu.dot_dimension_numbers<[1], [0], [0], [1], [0, 0, 1, 1], [], []>} : vector<8x32xf32>, vector<32x128xf32>, vector<8x128xf32> -> vector<8x128xf32>
    %163 = arith.addf %162, %8 : vector<8x128xf32>
    %164 = arith.addf %34, %147 : vector<8x128xf32>
    %165 = math.tanh %164 : vector<8x128xf32>
    %166 = arith.mulf %165, %11 : vector<8x128xf32>
    %167 = arith.addf %166, %14 : vector<8x128xf32>
    %168 = vector.extract_strided_slice %167 {offsets = [0, 0], sizes = [8, 32], strides = [1, 1]} : vector<8x128xf32> to vector<8x32xf32>
    %169 = vector.extract_strided_slice %167 {offsets = [0, 32], sizes = [8, 32], strides = [1, 1]} : vector<8x128xf32> to vector<8x32xf32>
    %170 = vector.extract_strided_slice %167 {offsets = [0, 64], sizes = [8, 32], strides = [1, 1]} : vector<8x128xf32> to vector<8x32xf32>
    %171 = vector.extract_strided_slice %167 {offsets = [0, 96], sizes = [8, 32], strides = [1, 1]} : vector<8x128xf32> to vector<8x32xf32>
    %172 = arith.mulf %169, %143 : vector<8x32xf32>
    %173 = arith.mulf %168, %171 : vector<8x32xf32>
    %174 = arith.addf %172, %173 : vector<8x32xf32>
    %175 = math.tanh %174 : vector<8x32xf32>
    %176 = arith.mulf %170, %175 : vector<8x32xf32>
    %cst_45 = arith.constant dense<0.000000e+00> : vector<8x256xf32>
    %177 = tpu.matmul %176, %1, %cst_45 {dimension_numbers = #tpu.dot_dimension_numbers<[1], [0], [0], [1], [0, 0, 1, 1], [], []>} : vector<8x32xf32>, vector<32x256xf32>, vector<8x256xf32> -> vector<8x256xf32>
    %178 = vector.extract_strided_slice %177 {offsets = [0, 0], sizes = [8, 128], strides = [1, 1]} : vector<8x256xf32> to vector<8x128xf32>
    %179 = vector.extract_strided_slice %177 {offsets = [0, 128], sizes = [8, 128], strides = [1, 1]} : vector<8x256xf32> to vector<8x128xf32>
    %180 = arith.addf %179, %163 : vector<8x128xf32>
    %181 = math.tanh %180 : vector<8x128xf32>
    %182 = arith.mulf %181, %11 : vector<8x128xf32>
    %183 = arith.addf %182, %14 : vector<8x128xf32>
    %184 = vector.extract_strided_slice %183 {offsets = [0, 0], sizes = [8, 32], strides = [1, 1]} : vector<8x128xf32> to vector<8x32xf32>
    %185 = vector.extract_strided_slice %183 {offsets = [0, 32], sizes = [8, 32], strides = [1, 1]} : vector<8x128xf32> to vector<8x32xf32>
    %186 = vector.extract_strided_slice %183 {offsets = [0, 64], sizes = [8, 32], strides = [1, 1]} : vector<8x128xf32> to vector<8x32xf32>
    %187 = vector.extract_strided_slice %183 {offsets = [0, 96], sizes = [8, 32], strides = [1, 1]} : vector<8x128xf32> to vector<8x32xf32>
    %188 = arith.mulf %185, %159 : vector<8x32xf32>
    %189 = arith.mulf %184, %187 : vector<8x32xf32>
    %190 = arith.addf %188, %189 : vector<8x32xf32>
    %191 = math.tanh %190 : vector<8x32xf32>
    %192 = arith.mulf %186, %191 : vector<8x32xf32>
    %cst_46 = arith.constant dense<0.000000e+00> : vector<8x128xf32>
    %193 = tpu.matmul %192, %2, %cst_46 {dimension_numbers = #tpu.dot_dimension_numbers<[1], [0], [0], [1], [0, 0, 1, 1], [], []>} : vector<8x32xf32>, vector<32x128xf32>, vector<8x128xf32> -> vector<8x128xf32>
    %194 = arith.addf %193, %8 : vector<8x128xf32>
    %195 = arith.addf %38, %178 : vector<8x128xf32>
    %196 = math.tanh %195 : vector<8x128xf32>
    %197 = arith.mulf %196, %11 : vector<8x128xf32>
    %198 = arith.addf %197, %14 : vector<8x128xf32>
    %199 = vector.extract_strided_slice %198 {offsets = [0, 0], sizes = [8, 32], strides = [1, 1]} : vector<8x128xf32> to vector<8x32xf32>
    %200 = vector.extract_strided_slice %198 {offsets = [0, 32], sizes = [8, 32], strides = [1, 1]} : vector<8x128xf32> to vector<8x32xf32>
    %201 = vector.extract_strided_slice %198 {offsets = [0, 64], sizes = [8, 32], strides = [1, 1]} : vector<8x128xf32> to vector<8x32xf32>
    %202 = vector.extract_strided_slice %198 {offsets = [0, 96], sizes = [8, 32], strides = [1, 1]} : vector<8x128xf32> to vector<8x32xf32>
    %203 = arith.mulf %200, %174 : vector<8x32xf32>
    %204 = arith.mulf %199, %202 : vector<8x32xf32>
    %205 = arith.addf %203, %204 : vector<8x32xf32>
    %206 = math.tanh %205 : vector<8x32xf32>
    %207 = arith.mulf %201, %206 : vector<8x32xf32>
    %cst_47 = arith.constant dense<0.000000e+00> : vector<8x256xf32>
    %208 = tpu.matmul %207, %1, %cst_47 {dimension_numbers = #tpu.dot_dimension_numbers<[1], [0], [0], [1], [0, 0, 1, 1], [], []>} : vector<8x32xf32>, vector<32x256xf32>, vector<8x256xf32> -> vector<8x256xf32>
    %209 = vector.extract_strided_slice %208 {offsets = [0, 0], sizes = [8, 128], strides = [1, 1]} : vector<8x256xf32> to vector<8x128xf32>
    %210 = vector.extract_strided_slice %208 {offsets = [0, 128], sizes = [8, 128], strides = [1, 1]} : vector<8x256xf32> to vector<8x128xf32>
    %211 = arith.addf %210, %194 : vector<8x128xf32>
    %212 = math.tanh %211 : vector<8x128xf32>
    %213 = arith.mulf %212, %11 : vector<8x128xf32>
    %214 = arith.addf %213, %14 : vector<8x128xf32>
    %215 = vector.extract_strided_slice %214 {offsets = [0, 0], sizes = [8, 32], strides = [1, 1]} : vector<8x128xf32> to vector<8x32xf32>
    %216 = vector.extract_strided_slice %214 {offsets = [0, 32], sizes = [8, 32], strides = [1, 1]} : vector<8x128xf32> to vector<8x32xf32>
    %217 = vector.extract_strided_slice %214 {offsets = [0, 64], sizes = [8, 32], strides = [1, 1]} : vector<8x128xf32> to vector<8x32xf32>
    %218 = vector.extract_strided_slice %214 {offsets = [0, 96], sizes = [8, 32], strides = [1, 1]} : vector<8x128xf32> to vector<8x32xf32>
    %219 = arith.mulf %216, %190 : vector<8x32xf32>
    %220 = arith.mulf %215, %218 : vector<8x32xf32>
    %221 = arith.addf %219, %220 : vector<8x32xf32>
    %222 = math.tanh %221 : vector<8x32xf32>
    %223 = arith.mulf %217, %222 : vector<8x32xf32>
    %cst_48 = arith.constant dense<0.000000e+00> : vector<8x128xf32>
    %224 = tpu.matmul %223, %2, %cst_48 {dimension_numbers = #tpu.dot_dimension_numbers<[1], [0], [0], [1], [0, 0, 1, 1], [], []>} : vector<8x32xf32>, vector<32x128xf32>, vector<8x128xf32> -> vector<8x128xf32>
    %225 = arith.addf %224, %8 : vector<8x128xf32>
    %226 = arith.addf %42, %209 : vector<8x128xf32>
    %227 = math.tanh %226 : vector<8x128xf32>
    %228 = arith.mulf %227, %11 : vector<8x128xf32>
    %229 = arith.addf %228, %14 : vector<8x128xf32>
    %230 = vector.extract_strided_slice %229 {offsets = [0, 0], sizes = [8, 32], strides = [1, 1]} : vector<8x128xf32> to vector<8x32xf32>
    %231 = vector.extract_strided_slice %229 {offsets = [0, 32], sizes = [8, 32], strides = [1, 1]} : vector<8x128xf32> to vector<8x32xf32>
    %232 = vector.extract_strided_slice %229 {offsets = [0, 64], sizes = [8, 32], strides = [1, 1]} : vector<8x128xf32> to vector<8x32xf32>
    %233 = vector.extract_strided_slice %229 {offsets = [0, 96], sizes = [8, 32], strides = [1, 1]} : vector<8x128xf32> to vector<8x32xf32>
    %234 = arith.mulf %231, %205 : vector<8x32xf32>
    %235 = arith.mulf %230, %233 : vector<8x32xf32>
    %236 = arith.addf %234, %235 : vector<8x32xf32>
    %237 = math.tanh %236 : vector<8x32xf32>
    %238 = arith.mulf %232, %237 : vector<8x32xf32>
    %cst_49 = arith.constant dense<0.000000e+00> : vector<8x256xf32>
    %239 = tpu.matmul %238, %1, %cst_49 {dimension_numbers = #tpu.dot_dimension_numbers<[1], [0], [0], [1], [0, 0, 1, 1], [], []>} : vector<8x32xf32>, vector<32x256xf32>, vector<8x256xf32> -> vector<8x256xf32>
    %240 = vector.extract_strided_slice %239 {offsets = [0, 0], sizes = [8, 128], strides = [1, 1]} : vector<8x256xf32> to vector<8x128xf32>
    %241 = vector.extract_strided_slice %239 {offsets = [0, 128], sizes = [8, 128], strides = [1, 1]} : vector<8x256xf32> to vector<8x128xf32>
    %242 = arith.addf %241, %225 : vector<8x128xf32>
    %243 = math.tanh %242 : vector<8x128xf32>
    %244 = arith.mulf %243, %11 : vector<8x128xf32>
    %245 = arith.addf %244, %14 : vector<8x128xf32>
    %246 = vector.extract_strided_slice %245 {offsets = [0, 0], sizes = [8, 32], strides = [1, 1]} : vector<8x128xf32> to vector<8x32xf32>
    %247 = vector.extract_strided_slice %245 {offsets = [0, 32], sizes = [8, 32], strides = [1, 1]} : vector<8x128xf32> to vector<8x32xf32>
    %248 = vector.extract_strided_slice %245 {offsets = [0, 64], sizes = [8, 32], strides = [1, 1]} : vector<8x128xf32> to vector<8x32xf32>
    %249 = vector.extract_strided_slice %245 {offsets = [0, 96], sizes = [8, 32], strides = [1, 1]} : vector<8x128xf32> to vector<8x32xf32>
    %250 = arith.mulf %247, %221 : vector<8x32xf32>
    %251 = arith.mulf %246, %249 : vector<8x32xf32>
    %252 = arith.addf %250, %251 : vector<8x32xf32>
    %253 = math.tanh %252 : vector<8x32xf32>
    %254 = arith.mulf %248, %253 : vector<8x32xf32>
    %cst_50 = arith.constant dense<0.000000e+00> : vector<8x128xf32>
    %255 = tpu.matmul %254, %2, %cst_50 {dimension_numbers = #tpu.dot_dimension_numbers<[1], [0], [0], [1], [0, 0, 1, 1], [], []>} : vector<8x32xf32>, vector<32x128xf32>, vector<8x128xf32> -> vector<8x128xf32>
    %256 = arith.addf %255, %8 : vector<8x128xf32>
    %257 = arith.addf %46, %240 : vector<8x128xf32>
    %258 = math.tanh %257 : vector<8x128xf32>
    %259 = arith.mulf %258, %11 : vector<8x128xf32>
    %260 = arith.addf %259, %14 : vector<8x128xf32>
    %261 = vector.extract_strided_slice %260 {offsets = [0, 0], sizes = [8, 32], strides = [1, 1]} : vector<8x128xf32> to vector<8x32xf32>
    %262 = vector.extract_strided_slice %260 {offsets = [0, 32], sizes = [8, 32], strides = [1, 1]} : vector<8x128xf32> to vector<8x32xf32>
    %263 = vector.extract_strided_slice %260 {offsets = [0, 64], sizes = [8, 32], strides = [1, 1]} : vector<8x128xf32> to vector<8x32xf32>
    %264 = vector.extract_strided_slice %260 {offsets = [0, 96], sizes = [8, 32], strides = [1, 1]} : vector<8x128xf32> to vector<8x32xf32>
    %265 = arith.mulf %262, %236 : vector<8x32xf32>
    %266 = arith.mulf %261, %264 : vector<8x32xf32>
    %267 = arith.addf %265, %266 : vector<8x32xf32>
    %268 = math.tanh %267 : vector<8x32xf32>
    %269 = arith.mulf %263, %268 : vector<8x32xf32>
    %cst_51 = arith.constant dense<0.000000e+00> : vector<8x256xf32>
    %270 = tpu.matmul %269, %1, %cst_51 {dimension_numbers = #tpu.dot_dimension_numbers<[1], [0], [0], [1], [0, 0, 1, 1], [], []>} : vector<8x32xf32>, vector<32x256xf32>, vector<8x256xf32> -> vector<8x256xf32>
    %271 = vector.extract_strided_slice %270 {offsets = [0, 128], sizes = [8, 128], strides = [1, 1]} : vector<8x256xf32> to vector<8x128xf32>
    %272 = arith.addf %271, %256 : vector<8x128xf32>
    %273 = math.tanh %272 : vector<8x128xf32>
    %274 = arith.mulf %273, %11 : vector<8x128xf32>
    %275 = arith.addf %274, %14 : vector<8x128xf32>
    %276 = vector.extract_strided_slice %275 {offsets = [0, 0], sizes = [8, 32], strides = [1, 1]} : vector<8x128xf32> to vector<8x32xf32>
    %277 = vector.extract_strided_slice %275 {offsets = [0, 32], sizes = [8, 32], strides = [1, 1]} : vector<8x128xf32> to vector<8x32xf32>
    %278 = vector.extract_strided_slice %275 {offsets = [0, 64], sizes = [8, 32], strides = [1, 1]} : vector<8x128xf32> to vector<8x32xf32>
    %279 = vector.extract_strided_slice %275 {offsets = [0, 96], sizes = [8, 32], strides = [1, 1]} : vector<8x128xf32> to vector<8x32xf32>
    %280 = arith.mulf %277, %252 : vector<8x32xf32>
    %281 = arith.mulf %276, %279 : vector<8x32xf32>
    %282 = arith.addf %280, %281 : vector<8x32xf32>
    %283 = math.tanh %282 : vector<8x32xf32>
    %284 = arith.mulf %278, %283 : vector<8x32xf32>
    %c0_52 = arith.constant 0 : index
    %c0_53 = arith.constant 0 : index
    %285 = vector.load %arg9[%c0_52, %c0_53] : memref<1x32xf32, #tpu.memory_space<vmem>>, vector<1x32xf32>
    %286 = vector.broadcast %285 : vector<1x32xf32> to vector<8x32xf32>
    %287 = arith.mulf %284, %286 : vector<8x32xf32>
    %cst_54 = arith.constant dense<0.000000e+00> : vector<8xf32>
    %288 = vector.multi_reduction <add>, %287, %cst_54 [1] : vector<8x32xf32> to vector<8xf32>
    %289 = vector.shape_cast %288 : vector<8xf32> to vector<8x1xf32>
    %c0_55 = arith.constant 0 : index
    %c0_56 = arith.constant 0 : index
    %290 = vector.load %arg10[%c0_55, %c0_56] : memref<1x1xf32, #tpu.memory_space<vmem>>, vector<1x1xf32>
    %291 = vector.broadcast %290 : vector<1x1xf32> to vector<8x1xf32>
    %292 = arith.addf %289, %291 : vector<8x1xf32>
    %c0_57 = arith.constant 0 : index
    %c0_58 = arith.constant 0 : index
    %293 = vector.load %arg11[%c0_57, %c0_58] : memref<8x1xf32, #tpu.memory_space<vmem>>, vector<8x1xf32>
    tpu.vector_store %arg11[%c0_57, %c0_58], %292 {strides = array<i32>} : memref<8x1xf32, #tpu.memory_space<vmem>>, vector<8x1xf32>,
    return
  }
  func.func @transform_0(%arg0: i32) -> (i32, i32, i32) {
    %c0_i32 = arith.constant 0 : i32
    %c0_i32_0 = arith.constant 0 : i32
    %c0_i32_1 = arith.constant 0 : i32
    return %c0_i32, %arg0, %c0_i32_0 : i32, i32, i32
  }
  func.func @transform_1(%arg0: i32) -> (i32, i32) {
    %c0_i32 = arith.constant 0 : i32
    %c0_i32_0 = arith.constant 0 : i32
    %c0_i32_1 = arith.constant 0 : i32
    return %c0_i32, %c0_i32_0 : i32, i32
  }
  func.func @transform_2(%arg0: i32) -> (i32, i32) {
    %c0_i32 = arith.constant 0 : i32
    %c0_i32_0 = arith.constant 0 : i32
    %c0_i32_1 = arith.constant 0 : i32
    return %c0_i32, %c0_i32_0 : i32, i32
  }
  func.func @transform_3(%arg0: i32) -> (i32, i32) {
    %c0_i32 = arith.constant 0 : i32
    %c0_i32_0 = arith.constant 0 : i32
    %c0_i32_1 = arith.constant 0 : i32
    return %c0_i32, %c0_i32_0 : i32, i32
  }
  func.func @transform_4(%arg0: i32) -> (i32, i32) {
    %c0_i32 = arith.constant 0 : i32
    %c0_i32_0 = arith.constant 0 : i32
    %c0_i32_1 = arith.constant 0 : i32
    return %c0_i32, %c0_i32_0 : i32, i32
  }
  func.func @transform_5(%arg0: i32) -> (i32, i32) {
    %c0_i32 = arith.constant 0 : i32
    %c0_i32_0 = arith.constant 0 : i32
    %c0_i32_1 = arith.constant 0 : i32
    return %c0_i32, %c0_i32_0 : i32, i32
  }
  func.func @transform_6(%arg0: i32) -> (i32, i32) {
    %c0_i32 = arith.constant 0 : i32
    %c0_i32_0 = arith.constant 0 : i32
    %c0_i32_1 = arith.constant 0 : i32
    return %c0_i32, %c0_i32_0 : i32, i32
  }
  func.func @transform_7(%arg0: i32) -> (i32, i32) {
    %c0_i32 = arith.constant 0 : i32
    %c0_i32_0 = arith.constant 0 : i32
    %c0_i32_1 = arith.constant 0 : i32
    return %c0_i32, %c0_i32_0 : i32, i32
  }
  func.func @transform_8(%arg0: i32) -> (i32, i32) {
    %c0_i32 = arith.constant 0 : i32
    %c0_i32_0 = arith.constant 0 : i32
    %c0_i32_1 = arith.constant 0 : i32
    return %c0_i32, %c0_i32_0 : i32, i32
  }
  func.func @transform_9(%arg0: i32) -> (i32, i32) {
    %c0_i32 = arith.constant 0 : i32
    %c0_i32_0 = arith.constant 0 : i32
    %c0_i32_1 = arith.constant 0 : i32
    return %c0_i32, %c0_i32_0 : i32, i32
  }
  func.func @transform_10(%arg0: i32) -> (i32, i32) {
    %c0_i32 = arith.constant 0 : i32
    %c0_i32_0 = arith.constant 0 : i32
    return %arg0, %c0_i32 : i32, i32
  }
}

</mosaic_0001>

<llo_original>
// kernel: tpu_custom_call.1
$region0: #{tpu_custom_call.1}
  #allocation0 [shape = 'u32[]', space=smem, size = 0x4, offset = 0x4, fixed_abs, tag = 'smem constant byte address 0x4 - core index']
  #allocation1 [shape = 'u32[144,128]{1,0:T(1,128)}', space=vmem, size = 0x12000, scoped, tag = 'internal scratch']
  #allocation2 [shape = 'f32[1,1]{1,0:T(1,128)S(1)}', space=vmem, size = 0x200, scoped, tag = 'scoped memory for tpu_custom_call.1']
  %s0 = inlined_call_operand.vmem [shape: f32[8,8,5], index: 0, kind: input, shape index: {}]
  %s1 = inlined_call_operand.vmem [shape: f32[5,128], index: 1, kind: input, shape index: {}]
  %s2 = inlined_call_operand.vmem [shape: f32[1,128], index: 2, kind: input, shape index: {}]
  %s3 = inlined_call_operand.vmem [shape: f32[32,256], index: 3, kind: input, shape index: {}]
  %s4 = inlined_call_operand.vmem [shape: f32[32,128], index: 4, kind: input, shape index: {}]
  %s5 = inlined_call_operand.vmem [shape: f32[1,128], index: 5, kind: input, shape index: {}]
  %s6 = inlined_call_operand.vmem [shape: f32[1,128], index: 6, kind: input, shape index: {}]
  %s7 = inlined_call_operand.vmem [shape: f32[1,128], index: 7, kind: input, shape index: {}]
  %s8 = inlined_call_operand.vmem [shape: f32[1,32], index: 8, kind: input, shape index: {}]
  %s9 = inlined_call_operand.<no memory space> [shape: f32[1,1], index: 9, kind: input, shape index: {}]
  %s10 = inlined_call_operand.vmem [shape: f32[8,1], index: 10, kind: output, shape index: {}]
  %s11 = sld [smem:[#allocation0]]
  $region50: #{tpu_custom_call.1} parent=0
    _
  %s13 = ssub.s32 1, %s11
  %s14 = scalar_select 0, %s13, %s11
  %v15 = vstv %s9
  %16 = vst [vmem:[#allocation2] sm:$0x1] %v15
  // Predicated region
  $region2: #{tpu_custom_call.1} parent=0 // pred_check
    _
  $region3: #{tpu_custom_call.1} parent=0 // pred_check_branch
    %18 = sbr.rel (0) target = $region5
  $region4: #{tpu_custom_call.1} parent=0 // pred_region
    _
  $region5: #{tpu_custom_call.1} parent=0 // pred_fallthru
    _
  // Predicated region
  $region6: #{tpu_custom_call.1} parent=0 // pred_check
    _
  $region7: #{tpu_custom_call.1} parent=0 // pred_check_branch
    %20 = sbr.rel (0) target = $region9
  $region8: #{tpu_custom_call.1} parent=0 // pred_region
    _
  $region9: #{tpu_custom_call.1} parent=0 // pred_fallthru
    _
  // Predicated region
  $region10: #{tpu_custom_call.1} parent=0 // pred_check
    _
  $region11: #{tpu_custom_call.1} parent=0 // pred_check_branch
    %22 = sbr.rel (0) target = $region13
  $region12: #{tpu_custom_call.1} parent=0 // pred_region
    _
  $region13: #{tpu_custom_call.1} parent=0 // pred_fallthru
    _
  // Predicated region
  $region14: #{tpu_custom_call.1} parent=0 // pred_check
    _
  $region15: #{tpu_custom_call.1} parent=0 // pred_check_branch
    %24 = sbr.rel (0) target = $region17
  $region16: #{tpu_custom_call.1} parent=0 // pred_region
    _
  $region17: #{tpu_custom_call.1} parent=0 // pred_fallthru
    _
  // Predicated region
  $region18: #{tpu_custom_call.1} parent=0 // pred_check
    _
  $region19: #{tpu_custom_call.1} parent=0 // pred_check_branch
    %26 = sbr.rel (0) target = $region21
  $region20: #{tpu_custom_call.1} parent=0 // pred_region
    _
  $region21: #{tpu_custom_call.1} parent=0 // pred_fallthru
    _
  // Predicated region
  $region22: #{tpu_custom_call.1} parent=0 // pred_check
    _
  $region23: #{tpu_custom_call.1} parent=0 // pred_check_branch
    %28 = sbr.rel (0) target = $region25
  $region24: #{tpu_custom_call.1} parent=0 // pred_region
    _
  $region25: #{tpu_custom_call.1} parent=0 // pred_fallthru
    _
  // Predicated region
  $region26: #{tpu_custom_call.1} parent=0 // pred_check
    _
  $region27: #{tpu_custom_call.1} parent=0 // pred_check_branch
    %30 = sbr.rel (0) target = $region29
  $region28: #{tpu_custom_call.1} parent=0 // pred_region
    _
  $region29: #{tpu_custom_call.1} parent=0 // pred_fallthru
    _
  // Predicated region
  $region30: #{tpu_custom_call.1} parent=0 // pred_check
    _
  $region31: #{tpu_custom_call.1} parent=0 // pred_check_branch
    %32 = sbr.rel (0) target = $region33
  $region32: #{tpu_custom_call.1} parent=0 // pred_region
    _
  $region33: #{tpu_custom_call.1} parent=0 // pred_fallthru
    _
  // Predicated region
  $region34: #{tpu_custom_call.1} parent=0 // pred_check
    _
  $region35: #{tpu_custom_call.1} parent=0 // pred_check_branch
    %34 = sbr.rel (0) target = $region37
  $region36: #{tpu_custom_call.1} parent=0 // pred_region
    _
  $region37: #{tpu_custom_call.1} parent=0 // pred_fallthru
    _
  // Predicated region
  $region38: #{tpu_custom_call.1} parent=0 // pred_check
    _
  $region39: #{tpu_custom_call.1} parent=0 // pred_check_branch
    %36 = sbr.rel (0) target = $region41
  $region40: #{tpu_custom_call.1} parent=0 // pred_region
    _
  $region41: #{tpu_custom_call.1} parent=0 // pred_fallthru
    _
  %v37 = vld [vmem:[%s1] sm:$0x1f]
  %v38 = vld [vmem:[%s3] sm:$0xff]
  %v39 = vld [vmem:[%s3 + $0x8] sm:$0xff]
  %v40 = vld [vmem:[%s3 + $0x10] sm:$0xff]
  %v41 = vld [vmem:[%s3 + $0x18] sm:$0xff]
  %v42 = vld [vmem:[%s3 + $0x20] sm:$0xff]
  %v43 = vld [vmem:[%s3 + $0x28] sm:$0xff]
  %v44 = vld [vmem:[%s3 + $0x30] sm:$0xff]
  %v45 = vld [vmem:[%s3 + $0x38] sm:$0xff]
  %v46 = vld [vmem:[%s4] sm:$0xff]
  %v47 = vld [vmem:[%s4 + $0x8] sm:$0xff]
  %v48 = vld [vmem:[%s4 + $0x10] sm:$0xff]
  %v49 = vld [vmem:[%s4 + $0x18] sm:$0xff]
  %v50 = vld [vmem:[%s2] sm:$0x1]
  %v52 = vlaneseq
  %v53 = vshrl.u32 %v52, 7
  %v54 = vsub.s32 0, %v53
  %v55 = vrot.slane %v50, %v54
  %v57 = vld [vmem:[%s5] sm:$0x1]
  %v59 = vlaneseq
  %v60 = vshrl.u32 %v59, 7
  %v61 = vsub.s32 0, %v60
  %v62 = vrot.slane %v57, %v61
  %v64 = vld [vmem:[%s6] sm:$0x1]
  %v66 = vlaneseq
  %v67 = vshrl.u32 %v66, 7
  %v68 = vsub.s32 0, %v67
  %v69 = vrot.slane %v64, %v68
  %v71 = vld [vmem:[%s7] sm:$0x1]
  %v73 = vlaneseq
  %v74 = vshrl.u32 %v73, 7
  %v75 = vsub.s32 0, %v74
  %v76 = vrot.slane %v71, %v75
  %v78 = vld [vmem:[%s0] sm:$0xff]
  %vm79 = vcmask 39936
  %v81 = vsel %vm79, %v78, 0
  %vm83 = vcmask 1044480
  %v85 = vsel %vm83, %v37, 0
  %87 = vmatprep.subr.mxu0 0.0
  %88 = vmatpush1.msra.mxu0 0.0
  %89 = vmatprep.subr.mxu0 0.0
  %90 = vmatpush1.msra.mxu0 0.0
  %91 = vmatprep.subr.mxu0 0.0
  %92 = vmatpush1.msra.mxu0 0.0
  %93 = vmatprep.subr.mxu0 0.0
  %94 = vmatpush1.msra.mxu0 0.0
  %95 = vmatprep.subr.mxu0 0.0
  %96 = vmatpush1.msra.mxu0 0.0
  %97 = vmatprep.subr.mxu0 0.0
  %98 = vmatpush1.msra.mxu0 0.0
  %99 = vmatprep.subr.mxu0 0.0
  %100 = vmatpush1.msra.mxu0 0.0
  %101 = vmatprep.subr.mxu0 0.0
  %102 = vmatpush1.msra.mxu0 0.0
  %103 = vmatprep.subr.mxu0 0.0
  %104 = vmatpush1.msra.mxu0 0.0
  %105 = vmatprep.subr.mxu0 0.0
  %106 = vmatpush1.msra.mxu0 0.0
  %107 = vmatprep.subr.mxu0 0.0
  %108 = vmatpush1.msra.mxu0 0.0
  %109 = vmatprep.subr.mxu0 0.0
  %110 = vmatpush1.msra.mxu0 0.0
  %111 = vmatprep.subr.mxu0 0.0
  %112 = vmatpush1.msra.mxu0 0.0
  %113 = vmatprep.subr.mxu0 0.0
  %114 = vmatpush1.msra.mxu0 0.0
  %115 = vmatprep.subr.mxu0 0.0
  %116 = vmatpush1.msra.mxu0 0.0
  %117 = vmatprep.subr.mxu0 0.0
  %118 = vmatpush1.msra.mxu0 %v85
  %119 = vmatprep.subr.mxu0 0.0
  %120 = vmatpush2.msra.mxu0 0.0
  %121 = vmatprep.subr.mxu0 0.0
  %122 = vmatpush2.msra.mxu0 0.0
  %123 = vmatprep.subr.mxu0 0.0
  %124 = vmatpush2.msra.mxu0 0.0
  %125 = vmatprep.subr.mxu0 0.0
  %126 = vmatpush2.msra.mxu0 0.0
  %127 = vmatprep.subr.mxu0 0.0
  %128 = vmatpush2.msra.mxu0 0.0
  %129 = vmatprep.subr.mxu0 0.0
  %130 = vmatpush2.msra.mxu0 0.0
  %131 = vmatprep.subr.mxu0 0.0
  %132 = vmatpush2.msra.mxu0 0.0
  %133 = vmatprep.subr.mxu0 0.0
  %134 = vmatpush2.msra.mxu0 0.0
  %135 = vmatprep.subr.mxu0 0.0
  %136 = vmatpush2.msra.mxu0 0.0
  %137 = vmatprep.subr.mxu0 0.0
  %138 = vmatpush2.msra.mxu0 0.0
  %139 = vmatprep.subr.mxu0 0.0
  %140 = vmatpush2.msra.mxu0 0.0
  %141 = vmatprep.subr.mxu0 0.0
  %142 = vmatpush2.msra.mxu0 0.0
  %143 = vmatprep.subr.mxu0 0.0
  %144 = vmatpush2.msra.mxu0 0.0
  %145 = vmatprep.subr.mxu0 0.0
  %146 = vmatpush2.msra.mxu0 0.0
  %147 = vmatprep.subr.mxu0 0.0
  %148 = vmatpush2.msra.mxu0 0.0
  %149 = vmatprep.subr.mxu0 0.0
  %150 = vmatpush2.msra.mxu0 0.0
  %151 = vmatprep.mubr.f32.mxu0 0.0
  %152 = vmatmul.mubr.f32.gmra.mxu0 %v81
  %v153 = vpop.f32.mrf.mxu0
  %v154 = vadd.f32 %v55, %v153
  %v155 = vpop.f32.mrf.mxu0
  %156 = vdwg.mxu0
  %s157 = scalar_lea.vmem %s0, 8
  %v158 = vld [vmem:[%s157] sm:$0xff]
  %v160 = vsel %vm79, %v158, 0
  %162 = vmatprep.subr.mxu0 0.0
  %163 = vmatpush1.msra.mxu0 0.0
  %164 = vmatprep.subr.mxu0 0.0
  %165 = vmatpush1.msra.mxu0 0.0
  %166 = vmatprep.subr.mxu0 0.0
  %167 = vmatpush1.msra.mxu0 0.0
  %168 = vmatprep.subr.mxu0 0.0
  %169 = vmatpush1.msra.mxu0 0.0
  %170 = vmatprep.subr.mxu0 0.0
  %171 = vmatpush1.msra.mxu0 0.0
  %172 = vmatprep.subr.mxu0 0.0
  %173 = vmatpush1.msra.mxu0 0.0
  %174 = vmatprep.subr.mxu0 0.0
  %175 = vmatpush1.msra.mxu0 0.0
  %176 = vmatprep.subr.mxu0 0.0
  %177 = vmatpush1.msra.mxu0 0.0
  %178 = vmatprep.subr.mxu0 0.0
  %179 = vmatpush1.msra.mxu0 0.0
  %180 = vmatprep.subr.mxu0 0.0
  %181 = vmatpush1.msra.mxu0 0.0
  %182 = vmatprep.subr.mxu0 0.0
  %183 = vmatpush1.msra.mxu0 0.0
  %184 = vmatprep.subr.mxu0 0.0
  %185 = vmatpush1.msra.mxu0 0.0
  %186 = vmatprep.subr.mxu0 0.0
  %187 = vmatpush1.msra.mxu0 0.0
  %188 = vmatprep.subr.mxu0 0.0
  %189 = vmatpush1.msra.mxu0 0.0
  %190 = vmatprep.subr.mxu0 0.0
  %191 = vmatpush1.msra.mxu0 0.0
  %192 = vmatprep.subr.mxu0 0.0
  %193 = vmatpush1.msra.mxu0 %v85
  %194 = vmatprep.subr.mxu0 0.0
  %195 = vmatpush2.msra.mxu0 0.0
  %196 = vmatprep.subr.mxu0 0.0
  %197 = vmatpush2.msra.mxu0 0.0
  %198 = vmatprep.subr.mxu0 0.0
  %199 = vmatpush2.msra.mxu0 0.0
  %200 = vmatprep.subr.mxu0 0.0
  %201 = vmatpush2.msra.mxu0 0.0
  %202 = vmatprep.subr.mxu0 0.0
  %203 = vmatpush2.msra.mxu0 0.0
  %204 = vmatprep.subr.mxu0 0.0
  %205 = vmatpush2.msra.mxu0 0.0
  %206 = vmatprep.subr.mxu0 0.0
  %207 = vmatpush2.msra.mxu0 0.0
  %208 = vmatprep.subr.mxu0 0.0
  %209 = vmatpush2.msra.mxu0 0.0
  %210 = vmatprep.subr.mxu0 0.0
  %211 = vmatpush2.msra.mxu0 0.0
  %212 = vmatprep.subr.mxu0 0.0
  %213 = vmatpush2.msra.mxu0 0.0
  %214 = vmatprep.subr.mxu0 0.0
  %215 = vmatpush2.msra.mxu0 0.0
  %216 = vmatprep.subr.mxu0 0.0
  %217 = vmatpush2.msra.mxu0 0.0
  %218 = vmatprep.subr.mxu0 0.0
  %219 = vmatpush2.msra.mxu0 0.0
  %220 = vmatprep.subr.mxu0 0.0
  %221 = vmatpush2.msra.mxu0 0.0
  %222 = vmatprep.subr.mxu0 0.0
  %223 = vmatpush2.msra.mxu0 0.0
  %224 = vmatprep.subr.mxu0 0.0
  %225 = vmatpush2.msra.mxu0 0.0
  %226 = vmatprep.mubr.f32.mxu0 0.0
  %227 = vmatmul.mubr.f32.gmra.mxu0 %v160
  %v228 = vpop.f32.mrf.mxu0
  %v229 = vadd.f32 %v55, %v228
  %v230 = vpop.f32.mrf.mxu0
  %231 = vdwg.mxu0
  %s232 = scalar_lea.vmem %s0, 16
  %v233 = vld [vmem:[%s232] sm:$0xff]
  %v235 = vsel %vm79, %v233, 0
  %237 = vmatprep.subr.mxu0 0.0
  %238 = vmatpush1.msra.mxu0 0.0
  %239 = vmatprep.subr.mxu0 0.0
  %240 = vmatpush1.msra.mxu0 0.0
  %241 = vmatprep.subr.mxu0 0.0
  %242 = vmatpush1.msra.mxu0 0.0
  %243 = vmatprep.subr.mxu0 0.0
  %244 = vmatpush1.msra.mxu0 0.0
  %245 = vmatprep.subr.mxu0 0.0
  %246 = vmatpush1.msra.mxu0 0.0
  %247 = vmatprep.subr.mxu0 0.0
  %248 = vmatpush1.msra.mxu0 0.0
  %249 = vmatprep.subr.mxu0 0.0
  %250 = vmatpush1.msra.mxu0 0.0
  %251 = vmatprep.subr.mxu0 0.0
  %252 = vmatpush1.msra.mxu0 0.0
  %253 = vmatprep.subr.mxu0 0.0
  %254 = vmatpush1.msra.mxu0 0.0
  %255 = vmatprep.subr.mxu0 0.0
  %256 = vmatpush1.msra.mxu0 0.0
  %257 = vmatprep.subr.mxu0 0.0
  %258 = vmatpush1.msra.mxu0 0.0
  %259 = vmatprep.subr.mxu0 0.0
  %260 = vmatpush1.msra.mxu0 0.0
  %261 = vmatprep.subr.mxu0 0.0
  %262 = vmatpush1.msra.mxu0 0.0
  %263 = vmatprep.subr.mxu0 0.0
  %264 = vmatpush1.msra.mxu0 0.0
  %265 = vmatprep.subr.mxu0 0.0
  %266 = vmatpush1.msra.mxu0 0.0
  %267 = vmatprep.subr.mxu0 0.0
  %268 = vmatpush1.msra.mxu0 %v85
  %269 = vmatprep.subr.mxu0 0.0
  %270 = vmatpush2.msra.mxu0 0.0
  %271 = vmatprep.subr.mxu0 0.0
  %272 = vmatpush2.msra.mxu0 0.0
  %273 = vmatprep.subr.mxu0 0.0
  %274 = vmatpush2.msra.mxu0 0.0
  %275 = vmatprep.subr.mxu0 0.0
  %276 = vmatpush2.msra.mxu0 0.0
  %277 = vmatprep.subr.mxu0 0.0
  %278 = vmatpush2.msra.mxu0 0.0
  %279 = vmatprep.subr.mxu0 0.0
  %280 = vmatpush2.msra.mxu0 0.0
  %281 = vmatprep.subr.mxu0 0.0
  %282 = vmatpush2.msra.mxu0 0.0
  %283 = vmatprep.subr.mxu0 0.0
  %284 = vmatpush2.msra.mxu0 0.0
  %285 = vmatprep.subr.mxu0 0.0
  %286 = vmatpush2.msra.mxu0 0.0
  %287 = vmatprep.subr.mxu0 0.0
  %288 = vmatpush2.msra.mxu0 0.0
  %289 = vmatprep.subr.mxu0 0.0
  %290 = vmatpush2.msra.mxu0 0.0
  %291 = vmatprep.subr.mxu0 0.0
  %292 = vmatpush2.msra.mxu0 0.0
  %293 = vmatprep.subr.mxu0 0.0
  %294 = vmatpush2.msra.mxu0 0.0
  %295 = vmatprep.subr.mxu0 0.0
  %296 = vmatpush2.msra.mxu0 0.0
  %297 = vmatprep.subr.mxu0 0.0
  %298 = vmatpush2.msra.mxu0 0.0
  %299 = vmatprep.subr.mxu0 0.0
  %300 = vmatpush2.msra.mxu0 0.0
  %301 = vmatprep.mubr.f32.mxu0 0.0
  %302 = vmatmul.mubr.f32.gmra.mxu0 %v235
  %v303 = vpop.f32.mrf.mxu0
  %v304 = vadd.f32 %v55, %v303
  %v305 = vpop.f32.mrf.mxu0
  %306 = vdwg.mxu0
  %s307 = scalar_lea.vmem %s0, 24
  %v308 = vld [vmem:[%s307] sm:$0xff]
  %v310 = vsel %vm79, %v308, 0
  %312 = vmatprep.subr.mxu0 0.0
  %313 = vmatpush1.msra.mxu0 0.0
  %314 = vmatprep.subr.mxu0 0.0
  %315 = vmatpush1.msra.mxu0 0.0
  %316 = vmatprep.subr.mxu0 0.0
  %317 = vmatpush1.msra.mxu0 0.0
  %318 = vmatprep.subr.mxu0 0.0
  %319 = vmatpush1.msra.mxu0 0.0
  %320 = vmatprep.subr.mxu0 0.0
  %321 = vmatpush1.msra.mxu0 0.0
  %322 = vmatprep.subr.mxu0 0.0
  %323 = vmatpush1.msra.mxu0 0.0
  %324 = vmatprep.subr.mxu0 0.0
  %325 = vmatpush1.msra.mxu0 0.0
  %326 = vmatprep.subr.mxu0 0.0
  %327 = vmatpush1.msra.mxu0 0.0
  %328 = vmatprep.subr.mxu0 0.0
  %329 = vmatpush1.msra.mxu0 0.0
  %330 = vmatprep.subr.mxu0 0.0
  %331 = vmatpush1.msra.mxu0 0.0
  %332 = vmatprep.subr.mxu0 0.0
  %333 = vmatpush1.msra.mxu0 0.0
  %334 = vmatprep.subr.mxu0 0.0
  %335 = vmatpush1.msra.mxu0 0.0
  %336 = vmatprep.subr.mxu0 0.0
  %337 = vmatpush1.msra.mxu0 0.0
  %338 = vmatprep.subr.mxu0 0.0
  %339 = vmatpush1.msra.mxu0 0.0
  %340 = vmatprep.subr.mxu0 0.0
  %341 = vmatpush1.msra.mxu0 0.0
  %342 = vmatprep.subr.mxu0 0.0
  %343 = vmatpush1.msra.mxu0 %v85
  %344 = vmatprep.subr.mxu0 0.0
  %345 = vmatpush2.msra.mxu0 0.0
  %346 = vmatprep.subr.mxu0 0.0
  %347 = vmatpush2.msra.mxu0 0.0
  %348 = vmatprep.subr.mxu0 0.0
  %349 = vmatpush2.msra.mxu0 0.0
  %350 = vmatprep.subr.mxu0 0.0
  %351 = vmatpush2.msra.mxu0 0.0
  %352 = vmatprep.subr.mxu0 0.0
  %353 = vmatpush2.msra.mxu0 0.0
  %354 = vmatprep.subr.mxu0 0.0
  %355 = vmatpush2.msra.mxu0 0.0
  %356 = vmatprep.subr.mxu0 0.0
  %357 = vmatpush2.msra.mxu0 0.0
  %358 = vmatprep.subr.mxu0 0.0
  %359 = vmatpush2.msra.mxu0 0.0
  %360 = vmatprep.subr.mxu0 0.0
  %361 = vmatpush2.msra.mxu0 0.0
  %362 = vmatprep.subr.mxu0 0.0
  %363 = vmatpush2.msra.mxu0 0.0
  %364 = vmatprep.subr.mxu0 0.0
  %365 = vmatpush2.msra.mxu0 0.0
  %366 = vmatprep.subr.mxu0 0.0
  %367 = vmatpush2.msra.mxu0 0.0
  %368 = vmatprep.subr.mxu0 0.0
  %369 = vmatpush2.msra.mxu0 0.0
  %370 = vmatprep.subr.mxu0 0.0
  %371 = vmatpush2.msra.mxu0 0.0
  %372 = vmatprep.subr.mxu0 0.0
  %373 = vmatpush2.msra.mxu0 0.0
  %374 = vmatprep.subr.mxu0 0.0
  %375 = vmatpush2.msra.mxu0 0.0
  %376 = vmatprep.mubr.f32.mxu0 0.0
  %377 = vmatmul.mubr.f32.gmra.mxu0 %v310
  %v378 = vpop.f32.mrf.mxu0
  %v379 = vadd.f32 %v55, %v378
  %v380 = vpop.f32.mrf.mxu0
  %381 = vdwg.mxu0
  %s382 = scalar_lea.vmem %s0, 32
  %v383 = vld [vmem:[%s382] sm:$0xff]
  %v385 = vsel %vm79, %v383, 0
  %387 = vmatprep.subr.mxu0 0.0
  %388 = vmatpush1.msra.mxu0 0.0
  %389 = vmatprep.subr.mxu0 0.0
  %390 = vmatpush1.msra.mxu0 0.0
  %391 = vmatprep.subr.mxu0 0.0
  %392 = vmatpush1.msra.mxu0 0.0
  %393 = vmatprep.subr.mxu0 0.0
  %394 = vmatpush1.msra.mxu0 0.0
  %395 = vmatprep.subr.mxu0 0.0
  %396 = vmatpush1.msra.mxu0 0.0
  %397 = vmatprep.subr.mxu0 0.0
  %398 = vmatpush1.msra.mxu0 0.0
  %399 = vmatprep.subr.mxu0 0.0
  %400 = vmatpush1.msra.mxu0 0.0
  %401 = vmatprep.subr.mxu0 0.0
  %402 = vmatpush1.msra.mxu0 0.0
  %403 = vmatprep.subr.mxu0 0.0
  %404 = vmatpush1.msra.mxu0 0.0
  %405 = vmatprep.subr.mxu0 0.0
  %406 = vmatpush1.msra.mxu0 0.0
  %407 = vmatprep.subr.mxu0 0.0
  %408 = vmatpush1.msra.mxu0 0.0
  %409 = vmatprep.subr.mxu0 0.0
  %410 = vmatpush1.msra.mxu0 0.0
  %411 = vmatprep.subr.mxu0 0.0
  %412 = vmatpush1.msra.mxu0 0.0
  %413 = vmatprep.subr.mxu0 0.0
  %414 = vmatpush1.msra.mxu0 0.0
  %415 = vmatprep.subr.mxu0 0.0
  %416 = vmatpush1.msra.mxu0 0.0
  %417 = vmatprep.subr.mxu0 0.0
  %418 = vmatpush1.msra.mxu0 %v85
  %419 = vmatprep.subr.mxu0 0.0
  %420 = vmatpush2.msra.mxu0 0.0
  %421 = vmatprep.subr.mxu0 0.0
  %422 = vmatpush2.msra.mxu0 0.0
  %423 = vmatprep.subr.mxu0 0.0
  %424 = vmatpush2.msra.mxu0 0.0
  %425 = vmatprep.subr.mxu0 0.0
  %426 = vmatpush2.msra.mxu0 0.0
  %427 = vmatprep.subr.mxu0 0.0
  %428 = vmatpush2.msra.mxu0 0.0
  %429 = vmatprep.subr.mxu0 0.0
  %430 = vmatpush2.msra.mxu0 0.0
  %431 = vmatprep.subr.mxu0 0.0
  %432 = vmatpush2.msra.mxu0 0.0
  %433 = vmatprep.subr.mxu0 0.0
  %434 = vmatpush2.msra.mxu0 0.0
  %435 = vmatprep.subr.mxu0 0.0
  %436 = vmatpush2.msra.mxu0 0.0
  %437 = vmatprep.subr.mxu0 0.0
  %438 = vmatpush2.msra.mxu0 0.0
  %439 = vmatprep.subr.mxu0 0.0
  %440 = vmatpush2.msra.mxu0 0.0
  %441 = vmatprep.subr.mxu0 0.0
  %442 = vmatpush2.msra.mxu0 0.0
  %443 = vmatprep.subr.mxu0 0.0
  %444 = vmatpush2.msra.mxu0 0.0
  %445 = vmatprep.subr.mxu0 0.0
  %446 = vmatpush2.msra.mxu0 0.0
  %447 = vmatprep.subr.mxu0 0.0
  %448 = vmatpush2.msra.mxu0 0.0
  %449 = vmatprep.subr.mxu0 0.0
  %450 = vmatpush2.msra.mxu0 0.0
  %451 = vmatprep.mubr.f32.mxu0 0.0
  %452 = vmatmul.mubr.f32.gmra.mxu0 %v385
  %v453 = vpop.f32.mrf.mxu0
  %v454 = vadd.f32 %v55, %v453
  %v455 = vpop.f32.mrf.mxu0
  %456 = vdwg.mxu0
  %s457 = scalar_lea.vmem %s0, 40
  %v458 = vld [vmem:[%s457] sm:$0xff]
  %v460 = vsel %vm79, %v458, 0
  %462 = vmatprep.subr.mxu0 0.0
  %463 = vmatpush1.msra.mxu0 0.0
  %464 = vmatprep.subr.mxu0 0.0
  %465 = vmatpush1.msra.mxu0 0.0
  %466 = vmatprep.subr.mxu0 0.0
  %467 = vmatpush1.msra.mxu0 0.0
  %468 = vmatprep.subr.mxu0 0.0
  %469 = vmatpush1.msra.mxu0 0.0
  %470 = vmatprep.subr.mxu0 0.0
  %471 = vmatpush1.msra.mxu0 0.0
  %472 = vmatprep.subr.mxu0 0.0
  %473 = vmatpush1.msra.mxu0 0.0
  %474 = vmatprep.subr.mxu0 0.0
  %475 = vmatpush1.msra.mxu0 0.0
  %476 = vmatprep.subr.mxu0 0.0
  %477 = vmatpush1.msra.mxu0 0.0
  %478 = vmatprep.subr.mxu0 0.0
  %479 = vmatpush1.msra.mxu0 0.0
  %480 = vmatprep.subr.mxu0 0.0
  %481 = vmatpush1.msra.mxu0 0.0
  %482 = vmatprep.subr.mxu0 0.0
  %483 = vmatpush1.msra.mxu0 0.0
  %484 = vmatprep.subr.mxu0 0.0
  %485 = vmatpush1.msra.mxu0 0.0
  %486 = vmatprep.subr.mxu0 0.0
  %487 = vmatpush1.msra.mxu0 0.0
  %488 = vmatprep.subr.mxu0 0.0
  %489 = vmatpush1.msra.mxu0 0.0
  %490 = vmatprep.subr.mxu0 0.0
  %491 = vmatpush1.msra.mxu0 0.0
  %492 = vmatprep.subr.mxu0 0.0
  %493 = vmatpush1.msra.mxu0 %v85
  %494 = vmatprep.subr.mxu0 0.0
  %495 = vmatpush2.msra.mxu0 0.0
  %496 = vmatprep.subr.mxu0 0.0
  %497 = vmatpush2.msra.mxu0 0.0
  %498 = vmatprep.subr.mxu0 0.0
  %499 = vmatpush2.msra.mxu0 0.0
  %500 = vmatprep.subr.mxu0 0.0
  %501 = vmatpush2.msra.mxu0 0.0
  %502 = vmatprep.subr.mxu0 0.0
  %503 = vmatpush2.msra.mxu0 0.0
  %504 = vmatprep.subr.mxu0 0.0
  %505 = vmatpush2.msra.mxu0 0.0
  %506 = vmatprep.subr.mxu0 0.0
  %507 = vmatpush2.msra.mxu0 0.0
  %508 = vmatprep.subr.mxu0 0.0
  %509 = vmatpush2.msra.mxu0 0.0
  %510 = vmatprep.subr.mxu0 0.0
  %511 = vmatpush2.msra.mxu0 0.0
  %512 = vmatprep.subr.mxu0 0.0
  %513 = vmatpush2.msra.mxu0 0.0
  %514 = vmatprep.subr.mxu0 0.0
  %515 = vmatpush2.msra.mxu0 0.0
  %516 = vmatprep.subr.mxu0 0.0
  %517 = vmatpush2.msra.mxu0 0.0
  %518 = vmatprep.subr.mxu0 0.0
  %519 = vmatpush2.msra.mxu0 0.0
  %520 = vmatprep.subr.mxu0 0.0
  %521 = vmatpush2.msra.mxu0 0.0
  %522 = vmatprep.subr.mxu0 0.0
  %523 = vmatpush2.msra.mxu0 0.0
  %524 = vmatprep.subr.mxu0 0.0
  %525 = vmatpush2.msra.mxu0 0.0
  %526 = vmatprep.mubr.f32.mxu0 0.0
  %527 = vmatmul.mubr.f32.gmra.mxu0 %v460
  %v528 = vpop.f32.mrf.mxu0
  %v529 = vadd.f32 %v55, %v528
  %v530 = vpop.f32.mrf.mxu0
  %531 = vdwg.mxu0
  %s532 = scalar_lea.vmem %s0, 48
  %v533 = vld [vmem:[%s532] sm:$0xff]
  %v535 = vsel %vm79, %v533, 0
  %537 = vmatprep.subr.mxu0 0.0
  %538 = vmatpush1.msra.mxu0 0.0
  %539 = vmatprep.subr.mxu0 0.0
  %540 = vmatpush1.msra.mxu0 0.0
  %541 = vmatprep.subr.mxu0 0.0
  %542 = vmatpush1.msra.mxu0 0.0
  %543 = vmatprep.subr.mxu0 0.0
  %544 = vmatpush1.msra.mxu0 0.0
  %545 = vmatprep.subr.mxu0 0.0
  %546 = vmatpush1.msra.mxu0 0.0
  %547 = vmatprep.subr.mxu0 0.0
  %548 = vmatpush1.msra.mxu0 0.0
  %549 = vmatprep.subr.mxu0 0.0
  %550 = vmatpush1.msra.mxu0 0.0
  %551 = vmatprep.subr.mxu0 0.0
  %552 = vmatpush1.msra.mxu0 0.0
  %553 = vmatprep.subr.mxu0 0.0
  %554 = vmatpush1.msra.mxu0 0.0
  %555 = vmatprep.subr.mxu0 0.0
  %556 = vmatpush1.msra.mxu0 0.0
  %557 = vmatprep.subr.mxu0 0.0
  %558 = vmatpush1.msra.mxu0 0.0
  %559 = vmatprep.subr.mxu0 0.0
  %560 = vmatpush1.msra.mxu0 0.0
  %561 = vmatprep.subr.mxu0 0.0
  %562 = vmatpush1.msra.mxu0 0.0
  %563 = vmatprep.subr.mxu0 0.0
  %564 = vmatpush1.msra.mxu0 0.0
  %565 = vmatprep.subr.mxu0 0.0
  %566 = vmatpush1.msra.mxu0 0.0
  %567 = vmatprep.subr.mxu0 0.0
  %568 = vmatpush1.msra.mxu0 %v85
  %569 = vmatprep.subr.mxu0 0.0
  %570 = vmatpush2.msra.mxu0 0.0
  %571 = vmatprep.subr.mxu0 0.0
  %572 = vmatpush2.msra.mxu0 0.0
  %573 = vmatprep.subr.mxu0 0.0
  %574 = vmatpush2.msra.mxu0 0.0
  %575 = vmatprep.subr.mxu0 0.0
  %576 = vmatpush2.msra.mxu0 0.0
  %577 = vmatprep.subr.mxu0 0.0
  %578 = vmatpush2.msra.mxu0 0.0
  %579 = vmatprep.subr.mxu0 0.0
  %580 = vmatpush2.msra.mxu0 0.0
  %581 = vmatprep.subr.mxu0 0.0
  %582 = vmatpush2.msra.mxu0 0.0
  %583 = vmatprep.subr.mxu0 0.0
  %584 = vmatpush2.msra.mxu0 0.0
  %585 = vmatprep.subr.mxu0 0.0
  %586 = vmatpush2.msra.mxu0 0.0
  %587 = vmatprep.subr.mxu0 0.0
  %588 = vmatpush2.msra.mxu0 0.0
  %589 = vmatprep.subr.mxu0 0.0
  %590 = vmatpush2.msra.mxu0 0.0
  %591 = vmatprep.subr.mxu0 0.0
  %592 = vmatpush2.msra.mxu0 0.0
  %593 = vmatprep.subr.mxu0 0.0
  %594 = vmatpush2.msra.mxu0 0.0
  %595 = vmatprep.subr.mxu0 0.0
  %596 = vmatpush2.msra.mxu0 0.0
  %597 = vmatprep.subr.mxu0 0.0
  %598 = vmatpush2.msra.mxu0 0.0
  %599 = vmatprep.subr.mxu0 0.0
  %600 = vmatpush2.msra.mxu0 0.0
  %601 = vmatprep.mubr.f32.mxu0 0.0
  %602 = vmatmul.mubr.f32.gmra.mxu0 %v535
  %v603 = vpop.f32.mrf.mxu0
  %v604 = vadd.f32 %v55, %v603
  %v605 = vpop.f32.mrf.mxu0
  %606 = vdwg.mxu0
  %s607 = scalar_lea.vmem %s0, 56
  %v608 = vld [vmem:[%s607] sm:$0xff]
  %v610 = vsel %vm79, %v608, 0
  %612 = vmatprep.subr.mxu0 0.0
  %613 = vmatpush1.msra.mxu0 0.0
  %614 = vmatprep.subr.mxu0 0.0
  %615 = vmatpush1.msra.mxu0 0.0
  %616 = vmatprep.subr.mxu0 0.0
  %617 = vmatpush1.msra.mxu0 0.0
  %618 = vmatprep.subr.mxu0 0.0
  %619 = vmatpush1.msra.mxu0 0.0
  %620 = vmatprep.subr.mxu0 0.0
  %621 = vmatpush1.msra.mxu0 0.0
  %622 = vmatprep.subr.mxu0 0.0
  %623 = vmatpush1.msra.mxu0 0.0
  %624 = vmatprep.subr.mxu0 0.0
  %625 = vmatpush1.msra.mxu0 0.0
  %626 = vmatprep.subr.mxu0 0.0
  %627 = vmatpush1.msra.mxu0 0.0
  %628 = vmatprep.subr.mxu0 0.0
  %629 = vmatpush1.msra.mxu0 0.0
  %630 = vmatprep.subr.mxu0 0.0
  %631 = vmatpush1.msra.mxu0 0.0
  %632 = vmatprep.subr.mxu0 0.0
  %633 = vmatpush1.msra.mxu0 0.0
  %634 = vmatprep.subr.mxu0 0.0
  %635 = vmatpush1.msra.mxu0 0.0
  %636 = vmatprep.subr.mxu0 0.0
  %637 = vmatpush1.msra.mxu0 0.0
  %638 = vmatprep.subr.mxu0 0.0
  %639 = vmatpush1.msra.mxu0 0.0
  %640 = vmatprep.subr.mxu0 0.0
  %641 = vmatpush1.msra.mxu0 0.0
  %642 = vmatprep.subr.mxu0 0.0
  %643 = vmatpush1.msra.mxu0 %v85
  %644 = vmatprep.subr.mxu0 0.0
  %645 = vmatpush2.msra.mxu0 0.0
  %646 = vmatprep.subr.mxu0 0.0
  %647 = vmatpush2.msra.mxu0 0.0
  %648 = vmatprep.subr.mxu0 0.0
  %649 = vmatpush2.msra.mxu0 0.0
  %650 = vmatprep.subr.mxu0 0.0
  %651 = vmatpush2.msra.mxu0 0.0
  %652 = vmatprep.subr.mxu0 0.0
  %653 = vmatpush2.msra.mxu0 0.0
  %654 = vmatprep.subr.mxu0 0.0
  %655 = vmatpush2.msra.mxu0 0.0
  %656 = vmatprep.subr.mxu0 0.0
  %657 = vmatpush2.msra.mxu0 0.0
  %658 = vmatprep.subr.mxu0 0.0
  %659 = vmatpush2.msra.mxu0 0.0
  %660 = vmatprep.subr.mxu0 0.0
  %661 = vmatpush2.msra.mxu0 0.0
  %662 = vmatprep.subr.mxu0 0.0
  %663 = vmatpush2.msra.mxu0 0.0
  %664 = vmatprep.subr.mxu0 0.0
  %665 = vmatpush2.msra.mxu0 0.0
  %666 = vmatprep.subr.mxu0 0.0
  %667 = vmatpush2.msra.mxu0 0.0
  %668 = vmatprep.subr.mxu0 0.0
  %669 = vmatpush2.msra.mxu0 0.0
  %670 = vmatprep.subr.mxu0 0.0
  %671 = vmatpush2.msra.mxu0 0.0
  %672 = vmatprep.subr.mxu0 0.0
  %673 = vmatpush2.msra.mxu0 0.0
  %674 = vmatprep.subr.mxu0 0.0
  %675 = vmatpush2.msra.mxu0 0.0
  %676 = vmatprep.mubr.f32.mxu0 0.0
  %677 = vmatmul.mubr.f32.gmra.mxu0 %v610
  %v678 = vpop.f32.mrf.mxu0
  %v679 = vadd.f32 %v55, %v678
  %v680 = vpop.f32.mrf.mxu0
  %681 = vdwg.mxu0
  %v682 = vtanh.pop %v154
  %v683 = vmul.f32 %v682, %v69
  %v684 = vadd.f32 %v683, %v76
  %686 = vrot.lane.b32.xlu0 %v684, 32
  %v687 = vpop.permute.xlu0 %686
  %v689 = vmul.f32 %v684, %v687
  %v690 = vtanh.pop %v689
  %692 = vrot.lane.b32.xlu0 %v690, 64
  %v693 = vpop.permute.xlu0 %692
  %v695 = vmul.f32 %v684, %v693
  %697 = vrot.lane.b32.xlu0 %v695, 64
  %v698 = vpop.permute.xlu0 %697
  %vm699 = vcmask 261120
  %v700 = vsel %vm699, %v698, 0
  %702 = vmatprep.subr.mxu0 0.0
  %703 = vmatpush1.msra.mxu0 0.0
  %704 = vmatprep.subr.mxu0 0.0
  %705 = vmatpush1.msra.mxu0 0.0
  %706 = vmatprep.subr.mxu0 0.0
  %707 = vmatpush1.msra.mxu0 0.0
  %708 = vmatprep.subr.mxu0 0.0
  %709 = vmatpush1.msra.mxu0 0.0
  %710 = vmatprep.subr.mxu0 0.0
  %711 = vmatpush1.msra.mxu0 0.0
  %712 = vmatprep.subr.mxu0 0.0
  %713 = vmatpush1.msra.mxu0 0.0
  %714 = vmatprep.subr.mxu0 0.0
  %715 = vmatpush1.msra.mxu0 0.0
  %716 = vmatprep.subr.mxu0 0.0
  %717 = vmatpush1.msra.mxu0 0.0
  %718 = vmatprep.subr.mxu0 0.0
  %719 = vmatpush1.msra.mxu0 0.0
  %720 = vmatprep.subr.mxu0 0.0
  %721 = vmatpush1.msra.mxu0 0.0
  %722 = vmatprep.subr.mxu0 0.0
  %723 = vmatpush1.msra.mxu0 0.0
  %724 = vmatprep.subr.mxu0 0.0
  %725 = vmatpush1.msra.mxu0 0.0
  %726 = vmatprep.subr.mxu0 %v45
  %727 = vmatpush1.msra.mxu0 %v44
  %728 = vmatprep.subr.mxu0 %v43
  %729 = vmatpush1.msra.mxu0 %v42
  %730 = vmatprep.subr.mxu0 %v41
  %731 = vmatpush1.msra.mxu0 %v40
  %732 = vmatprep.subr.mxu0 %v39
  %733 = vmatpush1.msra.mxu0 %v38
  %734 = vmatprep.subr.mxu0 0.0
  %735 = vmatpush2.msra.mxu0 0.0
  %736 = vmatprep.subr.mxu0 0.0
  %737 = vmatpush2.msra.mxu0 0.0
  %738 = vmatprep.subr.mxu0 0.0
  %739 = vmatpush2.msra.mxu0 0.0
  %740 = vmatprep.subr.mxu0 0.0
  %741 = vmatpush2.msra.mxu0 0.0
  %742 = vmatprep.subr.mxu0 0.0
  %743 = vmatpush2.msra.mxu0 0.0
  %744 = vmatprep.subr.mxu0 0.0
  %745 = vmatpush2.msra.mxu0 0.0
  %746 = vmatprep.subr.mxu0 0.0
  %747 = vmatpush2.msra.mxu0 0.0
  %748 = vmatprep.subr.mxu0 0.0
  %749 = vmatpush2.msra.mxu0 0.0
  %750 = vmatprep.subr.mxu0 0.0
  %751 = vmatpush2.msra.mxu0 0.0
  %752 = vmatprep.subr.mxu0 0.0
  %753 = vmatpush2.msra.mxu0 0.0
  %754 = vmatprep.subr.mxu0 0.0
  %755 = vmatpush2.msra.mxu0 0.0
  %756 = vmatprep.subr.mxu0 0.0
  %757 = vmatpush2.msra.mxu0 0.0
  %758 = vmatprep.subr.mxu0 0.0
  %759 = vmatpush2.msra.mxu0 0.0
  %760 = vmatprep.subr.mxu0 0.0
  %761 = vmatpush2.msra.mxu0 0.0
  %762 = vmatprep.subr.mxu0 0.0
  %763 = vmatpush2.msra.mxu0 0.0
  %764 = vmatprep.subr.mxu0 0.0
  %765 = vmatpush2.msra.mxu0 0.0
  %766 = vmatprep.mubr.f32.mxu0 0.0
  %767 = vmatmul.mubr.f32.gmra.mxu0 %v700
  %v768 = vpop.f32.mrf.mxu0
  %v769 = vadd.f32 0.0, %v768
  %v770 = vpop.f32.mrf.mxu0
  %v771 = vadd.f32 0.0, %v770
  %772 = vdwg.mxu0
  %v773 = vadd.f32 %v771, %v62
  %v774 = vtanh.pop %v773
  %v775 = vmul.f32 %v774, %v69
  %v776 = vadd.f32 %v775, %v76
  %778 = vrot.lane.b32.xlu0 %v776, 32
  %v779 = vpop.permute.xlu0 %778
  %v781 = vmul.f32 %v776, %v779
  %v782 = vtanh.pop %v781
  %784 = vrot.lane.b32.xlu0 %v782, 64
  %v785 = vpop.permute.xlu0 %784
  %v787 = vmul.f32 %v776, %v785
  %789 = vrot.lane.b32.xlu0 %v787, 64
  %v790 = vpop.permute.xlu0 %789
  %v791 = vsel %vm699, %v790, 0
  %793 = vmatprep.subr.mxu0 0.0
  %794 = vmatpush1.msra.mxu0 0.0
  %795 = vmatprep.subr.mxu0 0.0
  %796 = vmatpush1.msra.mxu0 0.0
  %797 = vmatprep.subr.mxu0 0.0
  %798 = vmatpush1.msra.mxu0 0.0
  %799 = vmatprep.subr.mxu0 0.0
  %800 = vmatpush1.msra.mxu0 0.0
  %801 = vmatprep.subr.mxu0 0.0
  %802 = vmatpush1.msra.mxu0 0.0
  %803 = vmatprep.subr.mxu0 0.0
  %804 = vmatpush1.msra.mxu0 0.0
  %805 = vmatprep.subr.mxu0 0.0
  %806 = vmatpush1.msra.mxu0 0.0
  %807 = vmatprep.subr.mxu0 0.0
  %808 = vmatpush1.msra.mxu0 0.0
  %809 = vmatprep.subr.mxu0 0.0
  %810 = vmatpush1.msra.mxu0 0.0
  %811 = vmatprep.subr.mxu0 0.0
  %812 = vmatpush1.msra.mxu0 0.0
  %813 = vmatprep.subr.mxu0 0.0
  %814 = vmatpush1.msra.mxu0 0.0
  %815 = vmatprep.subr.mxu0 0.0
  %816 = vmatpush1.msra.mxu0 0.0
  %817 = vmatprep.subr.mxu0 0.0
  %818 = vmatpush1.msra.mxu0 %v49
  %819 = vmatprep.subr.mxu0 0.0
  %820 = vmatpush1.msra.mxu0 %v48
  %821 = vmatprep.subr.mxu0 0.0
  %822 = vmatpush1.msra.mxu0 %v47
  %823 = vmatprep.subr.mxu0 0.0
  %824 = vmatpush1.msra.mxu0 %v46
  %825 = vmatprep.subr.mxu0 0.0
  %826 = vmatpush2.msra.mxu0 0.0
  %827 = vmatprep.subr.mxu0 0.0
  %828 = vmatpush2.msra.mxu0 0.0
  %829 = vmatprep.subr.mxu0 0.0
  %830 = vmatpush2.msra.mxu0 0.0
  %831 = vmatprep.subr.mxu0 0.0
  %832 = vmatpush2.msra.mxu0 0.0
  %833 = vmatprep.subr.mxu0 0.0
  %834 = vmatpush2.msra.mxu0 0.0
  %835 = vmatprep.subr.mxu0 0.0
  %836 = vmatpush2.msra.mxu0 0.0
  %837 = vmatprep.subr.mxu0 0.0
  %838 = vmatpush2.msra.mxu0 0.0
  %839 = vmatprep.subr.mxu0 0.0
  %840 = vmatpush2.msra.mxu0 0.0
  %841 = vmatprep.subr.mxu0 0.0
  %842 = vmatpush2.msra.mxu0 0.0
  %843 = vmatprep.subr.mxu0 0.0
  %844 = vmatpush2.msra.mxu0 0.0
  %845 = vmatprep.subr.mxu0 0.0
  %846 = vmatpush2.msra.mxu0 0.0
  %847 = vmatprep.subr.mxu0 0.0
  %848 = vmatpush2.msra.mxu0 0.0
  %849 = vmatprep.subr.mxu0 0.0
  %850 = vmatpush2.msra.mxu0 0.0
  %851 = vmatprep.subr.mxu0 0.0
  %852 = vmatpush2.msra.mxu0 0.0
  %853 = vmatprep.subr.mxu0 0.0
  %854 = vmatpush2.msra.mxu0 0.0
  %855 = vmatprep.subr.mxu0 0.0
  %856 = vmatpush2.msra.mxu0 0.0
  %857 = vmatprep.mubr.f32.mxu0 0.0
  %858 = vmatmul.mubr.f32.gmra.mxu0 %v791
  %v859 = vpop.f32.mrf.mxu0
  %v860 = vadd.f32 %v62, %v859
  %v861 = vpop.f32.mrf.mxu0
  %862 = vdwg.mxu0
  %v863 = vadd.f32 %v229, %v769
  %v864 = vtanh.pop %v863
  %v865 = vmul.f32 %v864, %v69
  %v866 = vadd.f32 %v865, %v76
  %868 = vrot.lane.b32.xlu0 %v689, 32
  %v869 = vpop.permute.xlu0 %868
  %v871 = vmul.f32 %v866, %v869
  %873 = vrot.lane.b32.xlu0 %v866, 32
  %v874 = vpop.permute.xlu0 %873
  %v876 = vmul.f32 %v866, %v874
  %878 = vrot.lane.b32.xlu0 %v876, 32
  %v879 = vpop.permute.xlu0 %878
  %v881 = vadd.f32 %v871, %v879
  %v882 = vtanh.pop %v881
  %884 = vrot.lane.b32.xlu0 %v882, 32
  %v885 = vpop.permute.xlu0 %884
  %v887 = vmul.f32 %v866, %v885
  %889 = vrot.lane.b32.xlu0 %v887, 64
  %v890 = vpop.permute.xlu0 %889
  %v891 = vsel %vm699, %v890, 0
  %893 = vmatprep.subr.mxu0 0.0
  %894 = vmatpush1.msra.mxu0 0.0
  %895 = vmatprep.subr.mxu0 0.0
  %896 = vmatpush1.msra.mxu0 0.0
  %897 = vmatprep.subr.mxu0 0.0
  %898 = vmatpush1.msra.mxu0 0.0
  %899 = vmatprep.subr.mxu0 0.0
  %900 = vmatpush1.msra.mxu0 0.0
  %901 = vmatprep.subr.mxu0 0.0
  %902 = vmatpush1.msra.mxu0 0.0
  %903 = vmatprep.subr.mxu0 0.0
  %904 = vmatpush1.msra.mxu0 0.0
  %905 = vmatprep.subr.mxu0 0.0
  %906 = vmatpush1.msra.mxu0 0.0
  %907 = vmatprep.subr.mxu0 0.0
  %908 = vmatpush1.msra.mxu0 0.0
  %909 = vmatprep.subr.mxu0 0.0
  %910 = vmatpush1.msra.mxu0 0.0
  %911 = vmatprep.subr.mxu0 0.0
  %912 = vmatpush1.msra.mxu0 0.0
  %913 = vmatprep.subr.mxu0 0.0
  %914 = vmatpush1.msra.mxu0 0.0
  %915 = vmatprep.subr.mxu0 0.0
  %916 = vmatpush1.msra.mxu0 0.0
  %917 = vmatprep.subr.mxu0 %v45
  %918 = vmatpush1.msra.mxu0 %v44
  %919 = vmatprep.subr.mxu0 %v43
  %920 = vmatpush1.msra.mxu0 %v42
  %921 = vmatprep.subr.mxu0 %v41
  %922 = vmatpush1.msra.mxu0 %v40
  %923 = vmatprep.subr.mxu0 %v39
  %924 = vmatpush1.msra.mxu0 %v38
  %925 = vmatprep.subr.mxu0 0.0
  %926 = vmatpush2.msra.mxu0 0.0
  %927 = vmatprep.subr.mxu0 0.0
  %928 = vmatpush2.msra.mxu0 0.0
  %929 = vmatprep.subr.mxu0 0.0
  %930 = vmatpush2.msra.mxu0 0.0
  %931 = vmatprep.subr.mxu0 0.0
  %932 = vmatpush2.msra.mxu0 0.0
  %933 = vmatprep.subr.mxu0 0.0
  %934 = vmatpush2.msra.mxu0 0.0
  %935 = vmatprep.subr.mxu0 0.0
  %936 = vmatpush2.msra.mxu0 0.0
  %937 = vmatprep.subr.mxu0 0.0
  %938 = vmatpush2.msra.mxu0 0.0
  %939 = vmatprep.subr.mxu0 0.0
  %940 = vmatpush2.msra.mxu0 0.0
  %941 = vmatprep.subr.mxu0 0.0
  %942 = vmatpush2.msra.mxu0 0.0
  %943 = vmatprep.subr.mxu0 0.0
  %944 = vmatpush2.msra.mxu0 0.0
  %945 = vmatprep.subr.mxu0 0.0
  %946 = vmatpush2.msra.mxu0 0.0
  %947 = vmatprep.subr.mxu0 0.0
  %948 = vmatpush2.msra.mxu0 0.0
  %949 = vmatprep.subr.mxu0 0.0
  %950 = vmatpush2.msra.mxu0 0.0
  %951 = vmatprep.subr.mxu0 0.0
  %952 = vmatpush2.msra.mxu0 0.0
  %953 = vmatprep.subr.mxu0 0.0
  %954 = vmatpush2.msra.mxu0 0.0
  %955 = vmatprep.subr.mxu0 0.0
  %956 = vmatpush2.msra.mxu0 0.0
  %957 = vmatprep.mubr.f32.mxu0 0.0
  %958 = vmatmul.mubr.f32.gmra.mxu0 %v891
  %v959 = vpop.f32.mrf.mxu0
  %v960 = vadd.f32 0.0, %v959
  %v961 = vpop.f32.mrf.mxu0
  %v962 = vadd.f32 0.0, %v961
  %963 = vdwg.mxu0
  %v964 = vadd.f32 %v962, %v860
  %v965 = vtanh.pop %v964
  %v966 = vmul.f32 %v965, %v69
  %v967 = vadd.f32 %v966, %v76
  %969 = vrot.lane.b32.xlu0 %v781, 32
  %v970 = vpop.permute.xlu0 %969
  %v972 = vmul.f32 %v967, %v970
  %974 = vrot.lane.b32.xlu0 %v967, 32
  %v975 = vpop.permute.xlu0 %974
  %v977 = vmul.f32 %v967, %v975
  %979 = vrot.lane.b32.xlu0 %v977, 32
  %v980 = vpop.permute.xlu0 %979
  %v982 = vadd.f32 %v972, %v980
  %v983 = vtanh.pop %v982
  %985 = vrot.lane.b32.xlu0 %v983, 32
  %v986 = vpop.permute.xlu0 %985
  %v988 = vmul.f32 %v967, %v986
  %990 = vrot.lane.b32.xlu0 %v988, 64
  %v991 = vpop.permute.xlu0 %990
  %v992 = vsel %vm699, %v991, 0
  %994 = vmatprep.subr.mxu0 0.0
  %995 = vmatpush1.msra.mxu0 0.0
  %996 = vmatprep.subr.mxu0 0.0
  %997 = vmatpush1.msra.mxu0 0.0
  %998 = vmatprep.subr.mxu0 0.0
  %999 = vmatpush1.msra.mxu0 0.0
  %1000 = vmatprep.subr.mxu0 0.0
  %1001 = vmatpush1.msra.mxu0 0.0
  %1002 = vmatprep.subr.mxu0 0.0
  %1003 = vmatpush1.msra.mxu0 0.0
  %1004 = vmatprep.subr.mxu0 0.0
  %1005 = vmatpush1.msra.mxu0 0.0
  %1006 = vmatprep.subr.mxu0 0.0
  %1007 = vmatpush1.msra.mxu0 0.0
  %1008 = vmatprep.subr.mxu0 0.0
  %1009 = vmatpush1.msra.mxu0 0.0
  %1010 = vmatprep.subr.mxu0 0.0
  %1011 = vmatpush1.msra.mxu0 0.0
  %1012 = vmatprep.subr.mxu0 0.0
  %1013 = vmatpush1.msra.mxu0 0.0
  %1014 = vmatprep.subr.mxu0 0.0
  %1015 = vmatpush1.msra.mxu0 0.0
  %1016 = vmatprep.subr.mxu0 0.0
  %1017 = vmatpush1.msra.mxu0 0.0
  %1018 = vmatprep.subr.mxu0 0.0
  %1019 = vmatpush1.msra.mxu0 %v49
  %1020 = vmatprep.subr.mxu0 0.0
  %1021 = vmatpush1.msra.mxu0 %v48
  %1022 = vmatprep.subr.mxu0 0.0
  %1023 = vmatpush1.msra.mxu0 %v47
  %1024 = vmatprep.subr.mxu0 0.0
  %1025 = vmatpush1.msra.mxu0 %v46
  %1026 = vmatprep.subr.mxu0 0.0
  %1027 = vmatpush2.msra.mxu0 0.0
  %1028 = vmatprep.subr.mxu0 0.0
  %1029 = vmatpush2.msra.mxu0 0.0
  %1030 = vmatprep.subr.mxu0 0.0
  %1031 = vmatpush2.msra.mxu0 0.0
  %1032 = vmatprep.subr.mxu0 0.0
  %1033 = vmatpush2.msra.mxu0 0.0
  %1034 = vmatprep.subr.mxu0 0.0
  %1035 = vmatpush2.msra.mxu0 0.0
  %1036 = vmatprep.subr.mxu0 0.0
  %1037 = vmatpush2.msra.mxu0 0.0
  %1038 = vmatprep.subr.mxu0 0.0
  %1039 = vmatpush2.msra.mxu0 0.0
  %1040 = vmatprep.subr.mxu0 0.0
  %1041 = vmatpush2.msra.mxu0 0.0
  %1042 = vmatprep.subr.mxu0 0.0
  %1043 = vmatpush2.msra.mxu0 0.0
  %1044 = vmatprep.subr.mxu0 0.0
  %1045 = vmatpush2.msra.mxu0 0.0
  %1046 = vmatprep.subr.mxu0 0.0
  %1047 = vmatpush2.msra.mxu0 0.0
  %1048 = vmatprep.subr.mxu0 0.0
  %1049 = vmatpush2.msra.mxu0 0.0
  %1050 = vmatprep.subr.mxu0 0.0
  %1051 = vmatpush2.msra.mxu0 0.0
  %1052 = vmatprep.subr.mxu0 0.0
  %1053 = vmatpush2.msra.mxu0 0.0
  %1054 = vmatprep.subr.mxu0 0.0
  %1055 = vmatpush2.msra.mxu0 0.0
  %1056 = vmatprep.subr.mxu0 0.0
  %1057 = vmatpush2.msra.mxu0 0.0
  %1058 = vmatprep.mubr.f32.mxu0 0.0
  %1059 = vmatmul.mubr.f32.gmra.mxu0 %v992
  %v1060 = vpop.f32.mrf.mxu0
  %v1061 = vadd.f32 %v62, %v1060
  %v1062 = vpop.f32.mrf.mxu0
  %1063 = vdwg.mxu0
  %v1064 = vadd.f32 %v304, %v960
  %v1065 = vtanh.pop %v1064
  %v1066 = vmul.f32 %v1065, %v69
  %v1067 = vadd.f32 %v1066, %v76
  %v1068 = vmul.f32 %v1067, %v881
  %1070 = vrot.lane.b32.xlu0 %v1067, 32
  %v1071 = vpop.permute.xlu0 %1070
  %v1073 = vmul.f32 %v1067, %v1071
  %1075 = vrot.lane.b32.xlu0 %v1073, 32
  %v1076 = vpop.permute.xlu0 %1075
  %v1078 = vadd.f32 %v1068, %v1076
  %v1079 = vtanh.pop %v1078
  %1081 = vrot.lane.b32.xlu0 %v1079, 32
  %v1082 = vpop.permute.xlu0 %1081
  %v1084 = vmul.f32 %v1067, %v1082
  %1086 = vrot.lane.b32.xlu0 %v1084, 64
  %v1087 = vpop.permute.xlu0 %1086
  %v1088 = vsel %vm699, %v1087, 0
  %1090 = vmatprep.subr.mxu0 0.0
  %1091 = vmatpush1.msra.mxu0 0.0
  %1092 = vmatprep.subr.mxu0 0.0
  %1093 = vmatpush1.msra.mxu0 0.0
  %1094 = vmatprep.subr.mxu0 0.0
  %1095 = vmatpush1.msra.mxu0 0.0
  %1096 = vmatprep.subr.mxu0 0.0
  %1097 = vmatpush1.msra.mxu0 0.0
  %1098 = vmatprep.subr.mxu0 0.0
  %1099 = vmatpush1.msra.mxu0 0.0
  %1100 = vmatprep.subr.mxu0 0.0
  %1101 = vmatpush1.msra.mxu0 0.0
  %1102 = vmatprep.subr.mxu0 0.0
  %1103 = vmatpush1.msra.mxu0 0.0
  %1104 = vmatprep.subr.mxu0 0.0
  %1105 = vmatpush1.msra.mxu0 0.0
  %1106 = vmatprep.subr.mxu0 0.0
  %1107 = vmatpush1.msra.mxu0 0.0
  %1108 = vmatprep.subr.mxu0 0.0
  %1109 = vmatpush1.msra.mxu0 0.0
  %1110 = vmatprep.subr.mxu0 0.0
  %1111 = vmatpush1.msra.mxu0 0.0
  %1112 = vmatprep.subr.mxu0 0.0
  %1113 = vmatpush1.msra.mxu0 0.0
  %1114 = vmatprep.subr.mxu0 %v45
  %1115 = vmatpush1.msra.mxu0 %v44
  %1116 = vmatprep.subr.mxu0 %v43
  %1117 = vmatpush1.msra.mxu0 %v42
  %1118 = vmatprep.subr.mxu0 %v41
  %1119 = vmatpush1.msra.mxu0 %v40
  %1120 = vmatprep.subr.mxu0 %v39
  %1121 = vmatpush1.msra.mxu0 %v38
  %1122 = vmatprep.subr.mxu0 0.0
  %1123 = vmatpush2.msra.mxu0 0.0
  %1124 = vmatprep.subr.mxu0 0.0
  %1125 = vmatpush2.msra.mxu0 0.0
  %1126 = vmatprep.subr.mxu0 0.0
  %1127 = vmatpush2.msra.mxu0 0.0
  %1128 = vmatprep.subr.mxu0 0.0
  %1129 = vmatpush2.msra.mxu0 0.0
  %1130 = vmatprep.subr.mxu0 0.0
  %1131 = vmatpush2.msra.mxu0 0.0
  %1132 = vmatprep.subr.mxu0 0.0
  %1133 = vmatpush2.msra.mxu0 0.0
  %1134 = vmatprep.subr.mxu0 0.0
  %1135 = vmatpush2.msra.mxu0 0.0
  %1136 = vmatprep.subr.mxu0 0.0
  %1137 = vmatpush2.msra.mxu0 0.0
  %1138 = vmatprep.subr.mxu0 0.0
  %1139 = vmatpush2.msra.mxu0 0.0
  %1140 = vmatprep.subr.mxu0 0.0
  %1141 = vmatpush2.msra.mxu0 0.0
  %1142 = vmatprep.subr.mxu0 0.0
  %1143 = vmatpush2.msra.mxu0 0.0
  %1144 = vmatprep.subr.mxu0 0.0
  %1145 = vmatpush2.msra.mxu0 0.0
  %1146 = vmatprep.subr.mxu0 0.0
  %1147 = vmatpush2.msra.mxu0 0.0
  %1148 = vmatprep.subr.mxu0 0.0
  %1149 = vmatpush2.msra.mxu0 0.0
  %1150 = vmatprep.subr.mxu0 0.0
  %1151 = vmatpush2.msra.mxu0 0.0
  %1152 = vmatprep.subr.mxu0 0.0
  %1153 = vmatpush2.msra.mxu0 0.0
  %1154 = vmatprep.mubr.f32.mxu0 0.0
  %1155 = vmatmul.mubr.f32.gmra.mxu0 %v1088
  %v1156 = vpop.f32.mrf.mxu0
  %v1157 = vadd.f32 0.0, %v1156
  %v1158 = vpop.f32.mrf.mxu0
  %v1159 = vadd.f32 0.0, %v1158
  %1160 = vdwg.mxu0
  %v1161 = vadd.f32 %v1159, %v1061
  %v1162 = vtanh.pop %v1161
  %v1163 = vmul.f32 %v1162, %v69
  %v1164 = vadd.f32 %v1163, %v76
  %v1165 = vmul.f32 %v1164, %v982
  %1167 = vrot.lane.b32.xlu0 %v1164, 32
  %v1168 = vpop.permute.xlu0 %1167
  %v1170 = vmul.f32 %v1164, %v1168
  %1172 = vrot.lane.b32.xlu0 %v1170, 32
  %v1173 = vpop.permute.xlu0 %1172
  %v1175 = vadd.f32 %v1165, %v1173
  %v1176 = vtanh.pop %v1175
  %1178 = vrot.lane.b32.xlu0 %v1176, 32
  %v1179 = vpop.permute.xlu0 %1178
  %v1181 = vmul.f32 %v1164, %v1179
  %1183 = vrot.lane.b32.xlu0 %v1181, 64
  %v1184 = vpop.permute.xlu0 %1183
  %v1185 = vsel %vm699, %v1184, 0
  %1187 = vmatprep.subr.mxu0 0.0
  %1188 = vmatpush1.msra.mxu0 0.0
  %1189 = vmatprep.subr.mxu0 0.0
  %1190 = vmatpush1.msra.mxu0 0.0
  %1191 = vmatprep.subr.mxu0 0.0
  %1192 = vmatpush1.msra.mxu0 0.0
  %1193 = vmatprep.subr.mxu0 0.0
  %1194 = vmatpush1.msra.mxu0 0.0
  %1195 = vmatprep.subr.mxu0 0.0
  %1196 = vmatpush1.msra.mxu0 0.0
  %1197 = vmatprep.subr.mxu0 0.0
  %1198 = vmatpush1.msra.mxu0 0.0
  %1199 = vmatprep.subr.mxu0 0.0
  %1200 = vmatpush1.msra.mxu0 0.0
  %1201 = vmatprep.subr.mxu0 0.0
  %1202 = vmatpush1.msra.mxu0 0.0
  %1203 = vmatprep.subr.mxu0 0.0
  %1204 = vmatpush1.msra.mxu0 0.0
  %1205 = vmatprep.subr.mxu0 0.0
  %1206 = vmatpush1.msra.mxu0 0.0
  %1207 = vmatprep.subr.mxu0 0.0
  %1208 = vmatpush1.msra.mxu0 0.0
  %1209 = vmatprep.subr.mxu0 0.0
  %1210 = vmatpush1.msra.mxu0 0.0
  %1211 = vmatprep.subr.mxu0 0.0
  %1212 = vmatpush1.msra.mxu0 %v49
  %1213 = vmatprep.subr.mxu0 0.0
  %1214 = vmatpush1.msra.mxu0 %v48
  %1215 = vmatprep.subr.mxu0 0.0
  %1216 = vmatpush1.msra.mxu0 %v47
  %1217 = vmatprep.subr.mxu0 0.0
  %1218 = vmatpush1.msra.mxu0 %v46
  %1219 = vmatprep.subr.mxu0 0.0
  %1220 = vmatpush2.msra.mxu0 0.0
  %1221 = vmatprep.subr.mxu0 0.0
  %1222 = vmatpush2.msra.mxu0 0.0
  %1223 = vmatprep.subr.mxu0 0.0
  %1224 = vmatpush2.msra.mxu0 0.0
  %1225 = vmatprep.subr.mxu0 0.0
  %1226 = vmatpush2.msra.mxu0 0.0
  %1227 = vmatprep.subr.mxu0 0.0
  %1228 = vmatpush2.msra.mxu0 0.0
  %1229 = vmatprep.subr.mxu0 0.0
  %1230 = vmatpush2.msra.mxu0 0.0
  %1231 = vmatprep.subr.mxu0 0.0
  %1232 = vmatpush2.msra.mxu0 0.0
  %1233 = vmatprep.subr.mxu0 0.0
  %1234 = vmatpush2.msra.mxu0 0.0
  %1235 = vmatprep.subr.mxu0 0.0
  %1236 = vmatpush2.msra.mxu0 0.0
  %1237 = vmatprep.subr.mxu0 0.0
  %1238 = vmatpush2.msra.mxu0 0.0
  %1239 = vmatprep.subr.mxu0 0.0
  %1240 = vmatpush2.msra.mxu0 0.0
  %1241 = vmatprep.subr.mxu0 0.0
  %1242 = vmatpush2.msra.mxu0 0.0
  %1243 = vmatprep.subr.mxu0 0.0
  %1244 = vmatpush2.msra.mxu0 0.0
  %1245 = vmatprep.subr.mxu0 0.0
  %1246 = vmatpush2.msra.mxu0 0.0
  %1247 = vmatprep.subr.mxu0 0.0
  %1248 = vmatpush2.msra.mxu0 0.0
  %1249 = vmatprep.subr.mxu0 0.0
  %1250 = vmatpush2.msra.mxu0 0.0
  %1251 = vmatprep.mubr.f32.mxu0 0.0
  %1252 = vmatmul.mubr.f32.gmra.mxu0 %v1185
  %v1253 = vpop.f32.mrf.mxu0
  %v1254 = vadd.f32 %v62, %v1253
  %v1255 = vpop.f32.mrf.mxu0
  %1256 = vdwg.mxu0
  %v1257 = vadd.f32 %v379, %v1157
  %v1258 = vtanh.pop %v1257
  %v1259 = vmul.f32 %v1258, %v69
  %v1260 = vadd.f32 %v1259, %v76
  %v1261 = vmul.f32 %v1260, %v1078
  %1263 = vrot.lane.b32.xlu0 %v1260, 32
  %v1264 = vpop.permute.xlu0 %1263
  %v1266 = vmul.f32 %v1260, %v1264
  %1268 = vrot.lane.b32.xlu0 %v1266, 32
  %v1269 = vpop.permute.xlu0 %1268
  %v1271 = vadd.f32 %v1261, %v1269
  %v1272 = vtanh.pop %v1271
  %1274 = vrot.lane.b32.xlu0 %v1272, 32
  %v1275 = vpop.permute.xlu0 %1274
  %v1277 = vmul.f32 %v1260, %v1275
  %1279 = vrot.lane.b32.xlu0 %v1277, 64
  %v1280 = vpop.permute.xlu0 %1279
  %v1281 = vsel %vm699, %v1280, 0
  %1283 = vmatprep.subr.mxu0 0.0
  %1284 = vmatpush1.msra.mxu0 0.0
  %1285 = vmatprep.subr.mxu0 0.0
  %1286 = vmatpush1.msra.mxu0 0.0
  %1287 = vmatprep.subr.mxu0 0.0
  %1288 = vmatpush1.msra.mxu0 0.0
  %1289 = vmatprep.subr.mxu0 0.0
  %1290 = vmatpush1.msra.mxu0 0.0
  %1291 = vmatprep.subr.mxu0 0.0
  %1292 = vmatpush1.msra.mxu0 0.0
  %1293 = vmatprep.subr.mxu0 0.0
  %1294 = vmatpush1.msra.mxu0 0.0
  %1295 = vmatprep.subr.mxu0 0.0
  %1296 = vmatpush1.msra.mxu0 0.0
  %1297 = vmatprep.subr.mxu0 0.0
  %1298 = vmatpush1.msra.mxu0 0.0
  %1299 = vmatprep.subr.mxu0 0.0
  %1300 = vmatpush1.msra.mxu0 0.0
  %1301 = vmatprep.subr.mxu0 0.0
  %1302 = vmatpush1.msra.mxu0 0.0
  %1303 = vmatprep.subr.mxu0 0.0
  %1304 = vmatpush1.msra.mxu0 0.0
  %1305 = vmatprep.subr.mxu0 0.0
  %1306 = vmatpush1.msra.mxu0 0.0
  %1307 = vmatprep.subr.mxu0 %v45
  %1308 = vmatpush1.msra.mxu0 %v44
  %1309 = vmatprep.subr.mxu0 %v43
  %1310 = vmatpush1.msra.mxu0 %v42
  %1311 = vmatprep.subr.mxu0 %v41
  %1312 = vmatpush1.msra.mxu0 %v40
  %1313 = vmatprep.subr.mxu0 %v39
  %1314 = vmatpush1.msra.mxu0 %v38
  %1315 = vmatprep.subr.mxu0 0.0
  %1316 = vmatpush2.msra.mxu0 0.0
  %1317 = vmatprep.subr.mxu0 0.0
  %1318 = vmatpush2.msra.mxu0 0.0
  %1319 = vmatprep.subr.mxu0 0.0
  %1320 = vmatpush2.msra.mxu0 0.0
  %1321 = vmatprep.subr.mxu0 0.0
  %1322 = vmatpush2.msra.mxu0 0.0
  %1323 = vmatprep.subr.mxu0 0.0
  %1324 = vmatpush2.msra.mxu0 0.0
  %1325 = vmatprep.subr.mxu0 0.0
  %1326 = vmatpush2.msra.mxu0 0.0
  %1327 = vmatprep.subr.mxu0 0.0
  %1328 = vmatpush2.msra.mxu0 0.0
  %1329 = vmatprep.subr.mxu0 0.0
  %1330 = vmatpush2.msra.mxu0 0.0
  %1331 = vmatprep.subr.mxu0 0.0
  %1332 = vmatpush2.msra.mxu0 0.0
  %1333 = vmatprep.subr.mxu0 0.0
  %1334 = vmatpush2.msra.mxu0 0.0
  %1335 = vmatprep.subr.mxu0 0.0
  %1336 = vmatpush2.msra.mxu0 0.0
  %1337 = vmatprep.subr.mxu0 0.0
  %1338 = vmatpush2.msra.mxu0 0.0
  %1339 = vmatprep.subr.mxu0 0.0
  %1340 = vmatpush2.msra.mxu0 0.0
  %1341 = vmatprep.subr.mxu0 0.0
  %1342 = vmatpush2.msra.mxu0 0.0
  %1343 = vmatprep.subr.mxu0 0.0
  %1344 = vmatpush2.msra.mxu0 0.0
  %1345 = vmatprep.subr.mxu0 0.0
  %1346 = vmatpush2.msra.mxu0 0.0
  %1347 = vmatprep.mubr.f32.mxu0 0.0
  %1348 = vmatmul.mubr.f32.gmra.mxu0 %v1281
  %v1349 = vpop.f32.mrf.mxu0
  %v1350 = vadd.f32 0.0, %v1349
  %v1351 = vpop.f32.mrf.mxu0
  %v1352 = vadd.f32 0.0, %v1351
  %1353 = vdwg.mxu0
  %v1354 = vadd.f32 %v1352, %v1254
  %v1355 = vtanh.pop %v1354
  %v1356 = vmul.f32 %v1355, %v69
  %v1357 = vadd.f32 %v1356, %v76
  %v1358 = vmul.f32 %v1357, %v1175
  %1360 = vrot.lane.b32.xlu0 %v1357, 32
  %v1361 = vpop.permute.xlu0 %1360
  %v1363 = vmul.f32 %v1357, %v1361
  %1365 = vrot.lane.b32.xlu0 %v1363, 32
  %v1366 = vpop.permute.xlu0 %1365
  %v1368 = vadd.f32 %v1358, %v1366
  %v1369 = vtanh.pop %v1368
  %1371 = vrot.lane.b32.xlu0 %v1369, 32
  %v1372 = vpop.permute.xlu0 %1371
  %v1374 = vmul.f32 %v1357, %v1372
  %1376 = vrot.lane.b32.xlu0 %v1374, 64
  %v1377 = vpop.permute.xlu0 %1376
  %v1378 = vsel %vm699, %v1377, 0
  %1380 = vmatprep.subr.mxu0 0.0
  %1381 = vmatpush1.msra.mxu0 0.0
  %1382 = vmatprep.subr.mxu0 0.0
  %1383 = vmatpush1.msra.mxu0 0.0
  %1384 = vmatprep.subr.mxu0 0.0
  %1385 = vmatpush1.msra.mxu0 0.0
  %1386 = vmatprep.subr.mxu0 0.0
  %1387 = vmatpush1.msra.mxu0 0.0
  %1388 = vmatprep.subr.mxu0 0.0
  %1389 = vmatpush1.msra.mxu0 0.0
  %1390 = vmatprep.subr.mxu0 0.0
  %1391 = vmatpush1.msra.mxu0 0.0
  %1392 = vmatprep.subr.mxu0 0.0
  %1393 = vmatpush1.msra.mxu0 0.0
  %1394 = vmatprep.subr.mxu0 0.0
  %1395 = vmatpush1.msra.mxu0 0.0
  %1396 = vmatprep.subr.mxu0 0.0
  %1397 = vmatpush1.msra.mxu0 0.0
  %1398 = vmatprep.subr.mxu0 0.0
  %1399 = vmatpush1.msra.mxu0 0.0
  %1400 = vmatprep.subr.mxu0 0.0
  %1401 = vmatpush1.msra.mxu0 0.0
  %1402 = vmatprep.subr.mxu0 0.0
  %1403 = vmatpush1.msra.mxu0 0.0
  %1404 = vmatprep.subr.mxu0 0.0
  %1405 = vmatpush1.msra.mxu0 %v49
  %1406 = vmatprep.subr.mxu0 0.0
  %1407 = vmatpush1.msra.mxu0 %v48
  %1408 = vmatprep.subr.mxu0 0.0
  %1409 = vmatpush1.msra.mxu0 %v47
  %1410 = vmatprep.subr.mxu0 0.0
  %1411 = vmatpush1.msra.mxu0 %v46
  %1412 = vmatprep.subr.mxu0 0.0
  %1413 = vmatpush2.msra.mxu0 0.0
  %1414 = vmatprep.subr.mxu0 0.0
  %1415 = vmatpush2.msra.mxu0 0.0
  %1416 = vmatprep.subr.mxu0 0.0
  %1417 = vmatpush2.msra.mxu0 0.0
  %1418 = vmatprep.subr.mxu0 0.0
  %1419 = vmatpush2.msra.mxu0 0.0
  %1420 = vmatprep.subr.mxu0 0.0
  %1421 = vmatpush2.msra.mxu0 0.0
  %1422 = vmatprep.subr.mxu0 0.0
  %1423 = vmatpush2.msra.mxu0 0.0
  %1424 = vmatprep.subr.mxu0 0.0
  %1425 = vmatpush2.msra.mxu0 0.0
  %1426 = vmatprep.subr.mxu0 0.0
  %1427 = vmatpush2.msra.mxu0 0.0
  %1428 = vmatprep.subr.mxu0 0.0
  %1429 = vmatpush2.msra.mxu0 0.0
  %1430 = vmatprep.subr.mxu0 0.0
  %1431 = vmatpush2.msra.mxu0 0.0
  %1432 = vmatprep.subr.mxu0 0.0
  %1433 = vmatpush2.msra.mxu0 0.0
  %1434 = vmatprep.subr.mxu0 0.0
  %1435 = vmatpush2.msra.mxu0 0.0
  %1436 = vmatprep.subr.mxu0 0.0
  %1437 = vmatpush2.msra.mxu0 0.0
  %1438 = vmatprep.subr.mxu0 0.0
  %1439 = vmatpush2.msra.mxu0 0.0
  %1440 = vmatprep.subr.mxu0 0.0
  %1441 = vmatpush2.msra.mxu0 0.0
  %1442 = vmatprep.subr.mxu0 0.0
  %1443 = vmatpush2.msra.mxu0 0.0
  %1444 = vmatprep.mubr.f32.mxu0 0.0
  %1445 = vmatmul.mubr.f32.gmra.mxu0 %v1378
  %v1446 = vpop.f32.mrf.mxu0
  %v1447 = vadd.f32 %v62, %v1446
  %v1448 = vpop.f32.mrf.mxu0
  %1449 = vdwg.mxu0
  %v1450 = vadd.f32 %v454, %v1350
  %v1451 = vtanh.pop %v1450
  %v1452 = vmul.f32 %v1451, %v69
  %v1453 = vadd.f32 %v1452, %v76
  %v1454 = vmul.f32 %v1453, %v1271
  %1456 = vrot.lane.b32.xlu0 %v1453, 32
  %v1457 = vpop.permute.xlu0 %1456
  %v1459 = vmul.f32 %v1453, %v1457
  %1461 = vrot.lane.b32.xlu0 %v1459, 32
  %v1462 = vpop.permute.xlu0 %1461
  %v1464 = vadd.f32 %v1454, %v1462
  %v1465 = vtanh.pop %v1464
  %1467 = vrot.lane.b32.xlu0 %v1465, 32
  %v1468 = vpop.permute.xlu0 %1467
  %v1470 = vmul.f32 %v1453, %v1468
  %1472 = vrot.lane.b32.xlu0 %v1470, 64
  %v1473 = vpop.permute.xlu0 %1472
  %v1474 = vsel %vm699, %v1473, 0
  %1476 = vmatprep.subr.mxu0 0.0
  %1477 = vmatpush1.msra.mxu0 0.0
  %1478 = vmatprep.subr.mxu0 0.0
  %1479 = vmatpush1.msra.mxu0 0.0
  %1480 = vmatprep.subr.mxu0 0.0
  %1481 = vmatpush1.msra.mxu0 0.0
  %1482 = vmatprep.subr.mxu0 0.0
  %1483 = vmatpush1.msra.mxu0 0.0
  %1484 = vmatprep.subr.mxu0 0.0
  %1485 = vmatpush1.msra.mxu0 0.0
  %1486 = vmatprep.subr.mxu0 0.0
  %1487 = vmatpush1.msra.mxu0 0.0
  %1488 = vmatprep.subr.mxu0 0.0
  %1489 = vmatpush1.msra.mxu0 0.0
  %1490 = vmatprep.subr.mxu0 0.0
  %1491 = vmatpush1.msra.mxu0 0.0
  %1492 = vmatprep.subr.mxu0 0.0
  %1493 = vmatpush1.msra.mxu0 0.0
  %1494 = vmatprep.subr.mxu0 0.0
  %1495 = vmatpush1.msra.mxu0 0.0
  %1496 = vmatprep.subr.mxu0 0.0
  %1497 = vmatpush1.msra.mxu0 0.0
  %1498 = vmatprep.subr.mxu0 0.0
  %1499 = vmatpush1.msra.mxu0 0.0
  %1500 = vmatprep.subr.mxu0 %v45
  %1501 = vmatpush1.msra.mxu0 %v44
  %1502 = vmatprep.subr.mxu0 %v43
  %1503 = vmatpush1.msra.mxu0 %v42
  %1504 = vmatprep.subr.mxu0 %v41
  %1505 = vmatpush1.msra.mxu0 %v40
  %1506 = vmatprep.subr.mxu0 %v39
  %1507 = vmatpush1.msra.mxu0 %v38
  %1508 = vmatprep.subr.mxu0 0.0
  %1509 = vmatpush2.msra.mxu0 0.0
  %1510 = vmatprep.subr.mxu0 0.0
  %1511 = vmatpush2.msra.mxu0 0.0
  %1512 = vmatprep.subr.mxu0 0.0
  %1513 = vmatpush2.msra.mxu0 0.0
  %1514 = vmatprep.subr.mxu0 0.0
  %1515 = vmatpush2.msra.mxu0 0.0
  %1516 = vmatprep.subr.mxu0 0.0
  %1517 = vmatpush2.msra.mxu0 0.0
  %1518 = vmatprep.subr.mxu0 0.0
  %1519 = vmatpush2.msra.mxu0 0.0
  %1520 = vmatprep.subr.mxu0 0.0
  %1521 = vmatpush2.msra.mxu0 0.0
  %1522 = vmatprep.subr.mxu0 0.0
  %1523 = vmatpush2.msra.mxu0 0.0
  %1524 = vmatprep.subr.mxu0 0.0
  %1525 = vmatpush2.msra.mxu0 0.0
  %1526 = vmatprep.subr.mxu0 0.0
  %1527 = vmatpush2.msra.mxu0 0.0
  %1528 = vmatprep.subr.mxu0 0.0
  %1529 = vmatpush2.msra.mxu0 0.0
  %1530 = vmatprep.subr.mxu0 0.0
  %1531 = vmatpush2.msra.mxu0 0.0
  %1532 = vmatprep.subr.mxu0 0.0
  %1533 = vmatpush2.msra.mxu0 0.0
  %1534 = vmatprep.subr.mxu0 0.0
  %1535 = vmatpush2.msra.mxu0 0.0
  %1536 = vmatprep.subr.mxu0 0.0
  %1537 = vmatpush2.msra.mxu0 0.0
  %1538 = vmatprep.subr.mxu0 0.0
  %1539 = vmatpush2.msra.mxu0 0.0
  %1540 = vmatprep.mubr.f32.mxu0 0.0
  %1541 = vmatmul.mubr.f32.gmra.mxu0 %v1474
  %v1542 = vpop.f32.mrf.mxu0
  %v1543 = vadd.f32 0.0, %v1542
  %v1544 = vpop.f32.mrf.mxu0
  %v1545 = vadd.f32 0.0, %v1544
  %1546 = vdwg.mxu0
  %v1547 = vadd.f32 %v1545, %v1447
  %v1548 = vtanh.pop %v1547
  %v1549 = vmul.f32 %v1548, %v69
  %v1550 = vadd.f32 %v1549, %v76
  %v1551 = vmul.f32 %v1550, %v1368
  %1553 = vrot.lane.b32.xlu0 %v1550, 32
  %v1554 = vpop.permute.xlu0 %1553
  %v1556 = vmul.f32 %v1550, %v1554
  %1558 = vrot.lane.b32.xlu0 %v1556, 32
  %v1559 = vpop.permute.xlu0 %1558
  %v1561 = vadd.f32 %v1551, %v1559
  %v1562 = vtanh.pop %v1561
  %1564 = vrot.lane.b32.xlu0 %v1562, 32
  %v1565 = vpop.permute.xlu0 %1564
  %v1567 = vmul.f32 %v1550, %v1565
  %1569 = vrot.lane.b32.xlu0 %v1567, 64
  %v1570 = vpop.permute.xlu0 %1569
  %v1571 = vsel %vm699, %v1570, 0
  %1573 = vmatprep.subr.mxu0 0.0
  %1574 = vmatpush1.msra.mxu0 0.0
  %1575 = vmatprep.subr.mxu0 0.0
  %1576 = vmatpush1.msra.mxu0 0.0
  %1577 = vmatprep.subr.mxu0 0.0
  %1578 = vmatpush1.msra.mxu0 0.0
  %1579 = vmatprep.subr.mxu0 0.0
  %1580 = vmatpush1.msra.mxu0 0.0
  %1581 = vmatprep.subr.mxu0 0.0
  %1582 = vmatpush1.msra.mxu0 0.0
  %1583 = vmatprep.subr.mxu0 0.0
  %1584 = vmatpush1.msra.mxu0 0.0
  %1585 = vmatprep.subr.mxu0 0.0
  %1586 = vmatpush1.msra.mxu0 0.0
  %1587 = vmatprep.subr.mxu0 0.0
  %1588 = vmatpush1.msra.mxu0 0.0
  %1589 = vmatprep.subr.mxu0 0.0
  %1590 = vmatpush1.msra.mxu0 0.0
  %1591 = vmatprep.subr.mxu0 0.0
  %1592 = vmatpush1.msra.mxu0 0.0
  %1593 = vmatprep.subr.mxu0 0.0
  %1594 = vmatpush1.msra.mxu0 0.0
  %1595 = vmatprep.subr.mxu0 0.0
  %1596 = vmatpush1.msra.mxu0 0.0
  %1597 = vmatprep.subr.mxu0 0.0
  %1598 = vmatpush1.msra.mxu0 %v49
  %1599 = vmatprep.subr.mxu0 0.0
  %1600 = vmatpush1.msra.mxu0 %v48
  %1601 = vmatprep.subr.mxu0 0.0
  %1602 = vmatpush1.msra.mxu0 %v47
  %1603 = vmatprep.subr.mxu0 0.0
  %1604 = vmatpush1.msra.mxu0 %v46
  %1605 = vmatprep.subr.mxu0 0.0
  %1606 = vmatpush2.msra.mxu0 0.0
  %1607 = vmatprep.subr.mxu0 0.0
  %1608 = vmatpush2.msra.mxu0 0.0
  %1609 = vmatprep.subr.mxu0 0.0
  %1610 = vmatpush2.msra.mxu0 0.0
  %1611 = vmatprep.subr.mxu0 0.0
  %1612 = vmatpush2.msra.mxu0 0.0
  %1613 = vmatprep.subr.mxu0 0.0
  %1614 = vmatpush2.msra.mxu0 0.0
  %1615 = vmatprep.subr.mxu0 0.0
  %1616 = vmatpush2.msra.mxu0 0.0
  %1617 = vmatprep.subr.mxu0 0.0
  %1618 = vmatpush2.msra.mxu0 0.0
  %1619 = vmatprep.subr.mxu0 0.0
  %1620 = vmatpush2.msra.mxu0 0.0
  %1621 = vmatprep.subr.mxu0 0.0
  %1622 = vmatpush2.msra.mxu0 0.0
  %1623 = vmatprep.subr.mxu0 0.0
  %1624 = vmatpush2.msra.mxu0 0.0
  %1625 = vmatprep.subr.mxu0 0.0
  %1626 = vmatpush2.msra.mxu0 0.0
  %1627 = vmatprep.subr.mxu0 0.0
  %1628 = vmatpush2.msra.mxu0 0.0
  %1629 = vmatprep.subr.mxu0 0.0
  %1630 = vmatpush2.msra.mxu0 0.0
  %1631 = vmatprep.subr.mxu0 0.0
  %1632 = vmatpush2.msra.mxu0 0.0
  %1633 = vmatprep.subr.mxu0 0.0
  %1634 = vmatpush2.msra.mxu0 0.0
  %1635 = vmatprep.subr.mxu0 0.0
  %1636 = vmatpush2.msra.mxu0 0.0
  %1637 = vmatprep.mubr.f32.mxu0 0.0
  %1638 = vmatmul.mubr.f32.gmra.mxu0 %v1571
  %v1639 = vpop.f32.mrf.mxu0
  %v1640 = vadd.f32 %v62, %v1639
  %v1641 = vpop.f32.mrf.mxu0
  %1642 = vdwg.mxu0
  %v1643 = vadd.f32 %v529, %v1543
  %v1644 = vtanh.pop %v1643
  %v1645 = vmul.f32 %v1644, %v69
  %v1646 = vadd.f32 %v1645, %v76
  %v1647 = vmul.f32 %v1646, %v1464
  %1649 = vrot.lane.b32.xlu0 %v1646, 32
  %v1650 = vpop.permute.xlu0 %1649
  %v1652 = vmul.f32 %v1646, %v1650
  %1654 = vrot.lane.b32.xlu0 %v1652, 32
  %v1655 = vpop.permute.xlu0 %1654
  %v1657 = vadd.f32 %v1647, %v1655
  %v1658 = vtanh.pop %v1657
  %1660 = vrot.lane.b32.xlu0 %v1658, 32
  %v1661 = vpop.permute.xlu0 %1660
  %v1663 = vmul.f32 %v1646, %v1661
  %1665 = vrot.lane.b32.xlu0 %v1663, 64
  %v1666 = vpop.permute.xlu0 %1665
  %v1667 = vsel %vm699, %v1666, 0
  %1669 = vmatprep.subr.mxu0 0.0
  %1670 = vmatpush1.msra.mxu0 0.0
  %1671 = vmatprep.subr.mxu0 0.0
  %1672 = vmatpush1.msra.mxu0 0.0
  %1673 = vmatprep.subr.mxu0 0.0
  %1674 = vmatpush1.msra.mxu0 0.0
  %1675 = vmatprep.subr.mxu0 0.0
  %1676 = vmatpush1.msra.mxu0 0.0
  %1677 = vmatprep.subr.mxu0 0.0
  %1678 = vmatpush1.msra.mxu0 0.0
  %1679 = vmatprep.subr.mxu0 0.0
  %1680 = vmatpush1.msra.mxu0 0.0
  %1681 = vmatprep.subr.mxu0 0.0
  %1682 = vmatpush1.msra.mxu0 0.0
  %1683 = vmatprep.subr.mxu0 0.0
  %1684 = vmatpush1.msra.mxu0 0.0
  %1685 = vmatprep.subr.mxu0 0.0
  %1686 = vmatpush1.msra.mxu0 0.0
  %1687 = vmatprep.subr.mxu0 0.0
  %1688 = vmatpush1.msra.mxu0 0.0
  %1689 = vmatprep.subr.mxu0 0.0
  %1690 = vmatpush1.msra.mxu0 0.0
  %1691 = vmatprep.subr.mxu0 0.0
  %1692 = vmatpush1.msra.mxu0 0.0
  %1693 = vmatprep.subr.mxu0 %v45
  %1694 = vmatpush1.msra.mxu0 %v44
  %1695 = vmatprep.subr.mxu0 %v43
  %1696 = vmatpush1.msra.mxu0 %v42
  %1697 = vmatprep.subr.mxu0 %v41
  %1698 = vmatpush1.msra.mxu0 %v40
  %1699 = vmatprep.subr.mxu0 %v39
  %1700 = vmatpush1.msra.mxu0 %v38
  %1701 = vmatprep.subr.mxu0 0.0
  %1702 = vmatpush2.msra.mxu0 0.0
  %1703 = vmatprep.subr.mxu0 0.0
  %1704 = vmatpush2.msra.mxu0 0.0
  %1705 = vmatprep.subr.mxu0 0.0
  %1706 = vmatpush2.msra.mxu0 0.0
  %1707 = vmatprep.subr.mxu0 0.0
  %1708 = vmatpush2.msra.mxu0 0.0
  %1709 = vmatprep.subr.mxu0 0.0
  %1710 = vmatpush2.msra.mxu0 0.0
  %1711 = vmatprep.subr.mxu0 0.0
  %1712 = vmatpush2.msra.mxu0 0.0
  %1713 = vmatprep.subr.mxu0 0.0
  %1714 = vmatpush2.msra.mxu0 0.0
  %1715 = vmatprep.subr.mxu0 0.0
  %1716 = vmatpush2.msra.mxu0 0.0
  %1717 = vmatprep.subr.mxu0 0.0
  %1718 = vmatpush2.msra.mxu0 0.0
  %1719 = vmatprep.subr.mxu0 0.0
  %1720 = vmatpush2.msra.mxu0 0.0
  %1721 = vmatprep.subr.mxu0 0.0
  %1722 = vmatpush2.msra.mxu0 0.0
  %1723 = vmatprep.subr.mxu0 0.0
  %1724 = vmatpush2.msra.mxu0 0.0
  %1725 = vmatprep.subr.mxu0 0.0
  %1726 = vmatpush2.msra.mxu0 0.0
  %1727 = vmatprep.subr.mxu0 0.0
  %1728 = vmatpush2.msra.mxu0 0.0
  %1729 = vmatprep.subr.mxu0 0.0
  %1730 = vmatpush2.msra.mxu0 0.0
  %1731 = vmatprep.subr.mxu0 0.0
  %1732 = vmatpush2.msra.mxu0 0.0
  %1733 = vmatprep.mubr.f32.mxu0 0.0
  %1734 = vmatmul.mubr.f32.gmra.mxu0 %v1667
  %v1735 = vpop.f32.mrf.mxu0
  %v1736 = vadd.f32 0.0, %v1735
  %v1737 = vpop.f32.mrf.mxu0
  %v1738 = vadd.f32 0.0, %v1737
  %1739 = vdwg.mxu0
  %v1740 = vadd.f32 %v1738, %v1640
  %v1741 = vtanh.pop %v1740
  %v1742 = vmul.f32 %v1741, %v69
  %v1743 = vadd.f32 %v1742, %v76
  %v1744 = vmul.f32 %v1743, %v1561
  %1746 = vrot.lane.b32.xlu0 %v1743, 32
  %v1747 = vpop.permute.xlu0 %1746
  %v1749 = vmul.f32 %v1743, %v1747
  %1751 = vrot.lane.b32.xlu0 %v1749, 32
  %v1752 = vpop.permute.xlu0 %1751
  %v1754 = vadd.f32 %v1744, %v1752
  %v1755 = vtanh.pop %v1754
  %1757 = vrot.lane.b32.xlu0 %v1755, 32
  %v1758 = vpop.permute.xlu0 %1757
  %v1760 = vmul.f32 %v1743, %v1758
  %1762 = vrot.lane.b32.xlu0 %v1760, 64
  %v1763 = vpop.permute.xlu0 %1762
  %v1764 = vsel %vm699, %v1763, 0
  %1766 = vmatprep.subr.mxu0 0.0
  %1767 = vmatpush1.msra.mxu0 0.0
  %1768 = vmatprep.subr.mxu0 0.0
  %1769 = vmatpush1.msra.mxu0 0.0
  %1770 = vmatprep.subr.mxu0 0.0
  %1771 = vmatpush1.msra.mxu0 0.0
  %1772 = vmatprep.subr.mxu0 0.0
  %1773 = vmatpush1.msra.mxu0 0.0
  %1774 = vmatprep.subr.mxu0 0.0
  %1775 = vmatpush1.msra.mxu0 0.0
  %1776 = vmatprep.subr.mxu0 0.0
  %1777 = vmatpush1.msra.mxu0 0.0
  %1778 = vmatprep.subr.mxu0 0.0
  %1779 = vmatpush1.msra.mxu0 0.0
  %1780 = vmatprep.subr.mxu0 0.0
  %1781 = vmatpush1.msra.mxu0 0.0
  %1782 = vmatprep.subr.mxu0 0.0
  %1783 = vmatpush1.msra.mxu0 0.0
  %1784 = vmatprep.subr.mxu0 0.0
  %1785 = vmatpush1.msra.mxu0 0.0
  %1786 = vmatprep.subr.mxu0 0.0
  %1787 = vmatpush1.msra.mxu0 0.0
  %1788 = vmatprep.subr.mxu0 0.0
  %1789 = vmatpush1.msra.mxu0 0.0
  %1790 = vmatprep.subr.mxu0 0.0
  %1791 = vmatpush1.msra.mxu0 %v49
  %1792 = vmatprep.subr.mxu0 0.0
  %1793 = vmatpush1.msra.mxu0 %v48
  %1794 = vmatprep.subr.mxu0 0.0
  %1795 = vmatpush1.msra.mxu0 %v47
  %1796 = vmatprep.subr.mxu0 0.0
  %1797 = vmatpush1.msra.mxu0 %v46
  %1798 = vmatprep.subr.mxu0 0.0
  %1799 = vmatpush2.msra.mxu0 0.0
  %1800 = vmatprep.subr.mxu0 0.0
  %1801 = vmatpush2.msra.mxu0 0.0
  %1802 = vmatprep.subr.mxu0 0.0
  %1803 = vmatpush2.msra.mxu0 0.0
  %1804 = vmatprep.subr.mxu0 0.0
  %1805 = vmatpush2.msra.mxu0 0.0
  %1806 = vmatprep.subr.mxu0 0.0
  %1807 = vmatpush2.msra.mxu0 0.0
  %1808 = vmatprep.subr.mxu0 0.0
  %1809 = vmatpush2.msra.mxu0 0.0
  %1810 = vmatprep.subr.mxu0 0.0
  %1811 = vmatpush2.msra.mxu0 0.0
  %1812 = vmatprep.subr.mxu0 0.0
  %1813 = vmatpush2.msra.mxu0 0.0
  %1814 = vmatprep.subr.mxu0 0.0
  %1815 = vmatpush2.msra.mxu0 0.0
  %1816 = vmatprep.subr.mxu0 0.0
  %1817 = vmatpush2.msra.mxu0 0.0
  %1818 = vmatprep.subr.mxu0 0.0
  %1819 = vmatpush2.msra.mxu0 0.0
  %1820 = vmatprep.subr.mxu0 0.0
  %1821 = vmatpush2.msra.mxu0 0.0
  %1822 = vmatprep.subr.mxu0 0.0
  %1823 = vmatpush2.msra.mxu0 0.0
  %1824 = vmatprep.subr.mxu0 0.0
  %1825 = vmatpush2.msra.mxu0 0.0
  %1826 = vmatprep.subr.mxu0 0.0
  %1827 = vmatpush2.msra.mxu0 0.0
  %1828 = vmatprep.subr.mxu0 0.0
  %1829 = vmatpush2.msra.mxu0 0.0
  %1830 = vmatprep.mubr.f32.mxu0 0.0
  %1831 = vmatmul.mubr.f32.gmra.mxu0 %v1764
  %v1832 = vpop.f32.mrf.mxu0
  %v1833 = vadd.f32 %v62, %v1832
  %v1834 = vpop.f32.mrf.mxu0
  %1835 = vdwg.mxu0
  %v1836 = vadd.f32 %v604, %v1736
  %v1837 = vtanh.pop %v1836
  %v1838 = vmul.f32 %v1837, %v69
  %v1839 = vadd.f32 %v1838, %v76
  %v1840 = vmul.f32 %v1839, %v1657
  %1842 = vrot.lane.b32.xlu0 %v1839, 32
  %v1843 = vpop.permute.xlu0 %1842
  %v1845 = vmul.f32 %v1839, %v1843
  %1847 = vrot.lane.b32.xlu0 %v1845, 32
  %v1848 = vpop.permute.xlu0 %1847
  %v1850 = vadd.f32 %v1840, %v1848
  %v1851 = vtanh.pop %v1850
  %1853 = vrot.lane.b32.xlu0 %v1851, 32
  %v1854 = vpop.permute.xlu0 %1853
  %v1856 = vmul.f32 %v1839, %v1854
  %1858 = vrot.lane.b32.xlu0 %v1856, 64
  %v1859 = vpop.permute.xlu0 %1858
  %v1860 = vsel %vm699, %v1859, 0
  %1862 = vmatprep.subr.mxu0 0.0
  %1863 = vmatpush1.msra.mxu0 0.0
  %1864 = vmatprep.subr.mxu0 0.0
  %1865 = vmatpush1.msra.mxu0 0.0
  %1866 = vmatprep.subr.mxu0 0.0
  %1867 = vmatpush1.msra.mxu0 0.0
  %1868 = vmatprep.subr.mxu0 0.0
  %1869 = vmatpush1.msra.mxu0 0.0
  %1870 = vmatprep.subr.mxu0 0.0
  %1871 = vmatpush1.msra.mxu0 0.0
  %1872 = vmatprep.subr.mxu0 0.0
  %1873 = vmatpush1.msra.mxu0 0.0
  %1874 = vmatprep.subr.mxu0 0.0
  %1875 = vmatpush1.msra.mxu0 0.0
  %1876 = vmatprep.subr.mxu0 0.0
  %1877 = vmatpush1.msra.mxu0 0.0
  %1878 = vmatprep.subr.mxu0 0.0
  %1879 = vmatpush1.msra.mxu0 0.0
  %1880 = vmatprep.subr.mxu0 0.0
  %1881 = vmatpush1.msra.mxu0 0.0
  %1882 = vmatprep.subr.mxu0 0.0
  %1883 = vmatpush1.msra.mxu0 0.0
  %1884 = vmatprep.subr.mxu0 0.0
  %1885 = vmatpush1.msra.mxu0 0.0
  %1886 = vmatprep.subr.mxu0 %v45
  %1887 = vmatpush1.msra.mxu0 %v44
  %1888 = vmatprep.subr.mxu0 %v43
  %1889 = vmatpush1.msra.mxu0 %v42
  %1890 = vmatprep.subr.mxu0 %v41
  %1891 = vmatpush1.msra.mxu0 %v40
  %1892 = vmatprep.subr.mxu0 %v39
  %1893 = vmatpush1.msra.mxu0 %v38
  %1894 = vmatprep.subr.mxu0 0.0
  %1895 = vmatpush2.msra.mxu0 0.0
  %1896 = vmatprep.subr.mxu0 0.0
  %1897 = vmatpush2.msra.mxu0 0.0
  %1898 = vmatprep.subr.mxu0 0.0
  %1899 = vmatpush2.msra.mxu0 0.0
  %1900 = vmatprep.subr.mxu0 0.0
  %1901 = vmatpush2.msra.mxu0 0.0
  %1902 = vmatprep.subr.mxu0 0.0
  %1903 = vmatpush2.msra.mxu0 0.0
  %1904 = vmatprep.subr.mxu0 0.0
  %1905 = vmatpush2.msra.mxu0 0.0
  %1906 = vmatprep.subr.mxu0 0.0
  %1907 = vmatpush2.msra.mxu0 0.0
  %1908 = vmatprep.subr.mxu0 0.0
  %1909 = vmatpush2.msra.mxu0 0.0
  %1910 = vmatprep.subr.mxu0 0.0
  %1911 = vmatpush2.msra.mxu0 0.0
  %1912 = vmatprep.subr.mxu0 0.0
  %1913 = vmatpush2.msra.mxu0 0.0
  %1914 = vmatprep.subr.mxu0 0.0
  %1915 = vmatpush2.msra.mxu0 0.0
  %1916 = vmatprep.subr.mxu0 0.0
  %1917 = vmatpush2.msra.mxu0 0.0
  %1918 = vmatprep.subr.mxu0 0.0
  %1919 = vmatpush2.msra.mxu0 0.0
  %1920 = vmatprep.subr.mxu0 0.0
  %1921 = vmatpush2.msra.mxu0 0.0
  %1922 = vmatprep.subr.mxu0 0.0
  %1923 = vmatpush2.msra.mxu0 0.0
  %1924 = vmatprep.subr.mxu0 0.0
  %1925 = vmatpush2.msra.mxu0 0.0
  %1926 = vmatprep.mubr.f32.mxu0 0.0
  %1927 = vmatmul.mubr.f32.gmra.mxu0 %v1860
  %v1928 = vpop.f32.mrf.mxu0
  %v1929 = vadd.f32 0.0, %v1928
  %v1930 = vpop.f32.mrf.mxu0
  %v1931 = vadd.f32 0.0, %v1930
  %1932 = vdwg.mxu0
  %v1933 = vadd.f32 %v1931, %v1833
  %v1934 = vtanh.pop %v1933
  %v1935 = vmul.f32 %v1934, %v69
  %v1936 = vadd.f32 %v1935, %v76
  %v1937 = vmul.f32 %v1936, %v1754
  %1939 = vrot.lane.b32.xlu0 %v1936, 32
  %v1940 = vpop.permute.xlu0 %1939
  %v1942 = vmul.f32 %v1936, %v1940
  %1944 = vrot.lane.b32.xlu0 %v1942, 32
  %v1945 = vpop.permute.xlu0 %1944
  %v1947 = vadd.f32 %v1937, %v1945
  %v1948 = vtanh.pop %v1947
  %1950 = vrot.lane.b32.xlu0 %v1948, 32
  %v1951 = vpop.permute.xlu0 %1950
  %v1953 = vmul.f32 %v1936, %v1951
  %1955 = vrot.lane.b32.xlu0 %v1953, 64
  %v1956 = vpop.permute.xlu0 %1955
  %v1957 = vsel %vm699, %v1956, 0
  %1959 = vmatprep.subr.mxu0 0.0
  %1960 = vmatpush1.msra.mxu0 0.0
  %1961 = vmatprep.subr.mxu0 0.0
  %1962 = vmatpush1.msra.mxu0 0.0
  %1963 = vmatprep.subr.mxu0 0.0
  %1964 = vmatpush1.msra.mxu0 0.0
  %1965 = vmatprep.subr.mxu0 0.0
  %1966 = vmatpush1.msra.mxu0 0.0
  %1967 = vmatprep.subr.mxu0 0.0
  %1968 = vmatpush1.msra.mxu0 0.0
  %1969 = vmatprep.subr.mxu0 0.0
  %1970 = vmatpush1.msra.mxu0 0.0
  %1971 = vmatprep.subr.mxu0 0.0
  %1972 = vmatpush1.msra.mxu0 0.0
  %1973 = vmatprep.subr.mxu0 0.0
  %1974 = vmatpush1.msra.mxu0 0.0
  %1975 = vmatprep.subr.mxu0 0.0
  %1976 = vmatpush1.msra.mxu0 0.0
  %1977 = vmatprep.subr.mxu0 0.0
  %1978 = vmatpush1.msra.mxu0 0.0
  %1979 = vmatprep.subr.mxu0 0.0
  %1980 = vmatpush1.msra.mxu0 0.0
  %1981 = vmatprep.subr.mxu0 0.0
  %1982 = vmatpush1.msra.mxu0 0.0
  %1983 = vmatprep.subr.mxu0 0.0
  %1984 = vmatpush1.msra.mxu0 %v49
  %1985 = vmatprep.subr.mxu0 0.0
  %1986 = vmatpush1.msra.mxu0 %v48
  %1987 = vmatprep.subr.mxu0 0.0
  %1988 = vmatpush1.msra.mxu0 %v47
  %1989 = vmatprep.subr.mxu0 0.0
  %1990 = vmatpush1.msra.mxu0 %v46
  %1991 = vmatprep.subr.mxu0 0.0
  %1992 = vmatpush2.msra.mxu0 0.0
  %1993 = vmatprep.subr.mxu0 0.0
  %1994 = vmatpush2.msra.mxu0 0.0
  %1995 = vmatprep.subr.mxu0 0.0
  %1996 = vmatpush2.msra.mxu0 0.0
  %1997 = vmatprep.subr.mxu0 0.0
  %1998 = vmatpush2.msra.mxu0 0.0
  %1999 = vmatprep.subr.mxu0 0.0
  %2000 = vmatpush2.msra.mxu0 0.0
  %2001 = vmatprep.subr.mxu0 0.0
  %2002 = vmatpush2.msra.mxu0 0.0
  %2003 = vmatprep.subr.mxu0 0.0
  %2004 = vmatpush2.msra.mxu0 0.0
  %2005 = vmatprep.subr.mxu0 0.0
  %2006 = vmatpush2.msra.mxu0 0.0
  %2007 = vmatprep.subr.mxu0 0.0
  %2008 = vmatpush2.msra.mxu0 0.0
  %2009 = vmatprep.subr.mxu0 0.0
  %2010 = vmatpush2.msra.mxu0 0.0
  %2011 = vmatprep.subr.mxu0 0.0
  %2012 = vmatpush2.msra.mxu0 0.0
  %2013 = vmatprep.subr.mxu0 0.0
  %2014 = vmatpush2.msra.mxu0 0.0
  %2015 = vmatprep.subr.mxu0 0.0
  %2016 = vmatpush2.msra.mxu0 0.0
  %2017 = vmatprep.subr.mxu0 0.0
  %2018 = vmatpush2.msra.mxu0 0.0
  %2019 = vmatprep.subr.mxu0 0.0
  %2020 = vmatpush2.msra.mxu0 0.0
  %2021 = vmatprep.subr.mxu0 0.0
  %2022 = vmatpush2.msra.mxu0 0.0
  %2023 = vmatprep.mubr.f32.mxu0 0.0
  %2024 = vmatmul.mubr.f32.gmra.mxu0 %v1957
  %v2025 = vpop.f32.mrf.mxu0
  %v2026 = vadd.f32 %v62, %v2025
  %v2027 = vpop.f32.mrf.mxu0
  %2028 = vdwg.mxu0
  %v2029 = vadd.f32 %v679, %v1929
  %v2030 = vtanh.pop %v2029
  %v2031 = vmul.f32 %v2030, %v69
  %v2032 = vadd.f32 %v2031, %v76
  %v2033 = vmul.f32 %v2032, %v1850
  %2035 = vrot.lane.b32.xlu0 %v2032, 32
  %v2036 = vpop.permute.xlu0 %2035
  %v2038 = vmul.f32 %v2032, %v2036
  %2040 = vrot.lane.b32.xlu0 %v2038, 32
  %v2041 = vpop.permute.xlu0 %2040
  %v2043 = vadd.f32 %v2033, %v2041
  %v2044 = vtanh.pop %v2043
  %2046 = vrot.lane.b32.xlu0 %v2044, 32
  %v2047 = vpop.permute.xlu0 %2046
  %v2049 = vmul.f32 %v2032, %v2047
  %2051 = vrot.lane.b32.xlu0 %v2049, 64
  %v2052 = vpop.permute.xlu0 %2051
  %v2053 = vsel %vm699, %v2052, 0
  %2055 = vmatprep.subr.mxu0 0.0
  %2056 = vmatpush1.msra.mxu0 0.0
  %2057 = vmatprep.subr.mxu0 0.0
  %2058 = vmatpush1.msra.mxu0 0.0
  %2059 = vmatprep.subr.mxu0 0.0
  %2060 = vmatpush1.msra.mxu0 0.0
  %2061 = vmatprep.subr.mxu0 0.0
  %2062 = vmatpush1.msra.mxu0 0.0
  %2063 = vmatprep.subr.mxu0 0.0
  %2064 = vmatpush1.msra.mxu0 0.0
  %2065 = vmatprep.subr.mxu0 0.0
  %2066 = vmatpush1.msra.mxu0 0.0
  %2067 = vmatprep.subr.mxu0 0.0
  %2068 = vmatpush1.msra.mxu0 0.0
  %2069 = vmatprep.subr.mxu0 0.0
  %2070 = vmatpush1.msra.mxu0 0.0
  %2071 = vmatprep.subr.mxu0 0.0
  %2072 = vmatpush1.msra.mxu0 0.0
  %2073 = vmatprep.subr.mxu0 0.0
  %2074 = vmatpush1.msra.mxu0 0.0
  %2075 = vmatprep.subr.mxu0 0.0
  %2076 = vmatpush1.msra.mxu0 0.0
  %2077 = vmatprep.subr.mxu0 0.0
  %2078 = vmatpush1.msra.mxu0 0.0
  %2079 = vmatprep.subr.mxu0 %v45
  %2080 = vmatpush1.msra.mxu0 %v44
  %2081 = vmatprep.subr.mxu0 %v43
  %2082 = vmatpush1.msra.mxu0 %v42
  %2083 = vmatprep.subr.mxu0 %v41
  %2084 = vmatpush1.msra.mxu0 %v40
  %2085 = vmatprep.subr.mxu0 %v39
  %2086 = vmatpush1.msra.mxu0 %v38
  %2087 = vmatprep.subr.mxu0 0.0
  %2088 = vmatpush2.msra.mxu0 0.0
  %2089 = vmatprep.subr.mxu0 0.0
  %2090 = vmatpush2.msra.mxu0 0.0
  %2091 = vmatprep.subr.mxu0 0.0
  %2092 = vmatpush2.msra.mxu0 0.0
  %2093 = vmatprep.subr.mxu0 0.0
  %2094 = vmatpush2.msra.mxu0 0.0
  %2095 = vmatprep.subr.mxu0 0.0
  %2096 = vmatpush2.msra.mxu0 0.0
  %2097 = vmatprep.subr.mxu0 0.0
  %2098 = vmatpush2.msra.mxu0 0.0
  %2099 = vmatprep.subr.mxu0 0.0
  %2100 = vmatpush2.msra.mxu0 0.0
  %2101 = vmatprep.subr.mxu0 0.0
  %2102 = vmatpush2.msra.mxu0 0.0
  %2103 = vmatprep.subr.mxu0 0.0
  %2104 = vmatpush2.msra.mxu0 0.0
  %2105 = vmatprep.subr.mxu0 0.0
  %2106 = vmatpush2.msra.mxu0 0.0
  %2107 = vmatprep.subr.mxu0 0.0
  %2108 = vmatpush2.msra.mxu0 0.0
  %2109 = vmatprep.subr.mxu0 0.0
  %2110 = vmatpush2.msra.mxu0 0.0
  %2111 = vmatprep.subr.mxu0 0.0
  %2112 = vmatpush2.msra.mxu0 0.0
  %2113 = vmatprep.subr.mxu0 0.0
  %2114 = vmatpush2.msra.mxu0 0.0
  %2115 = vmatprep.subr.mxu0 0.0
  %2116 = vmatpush2.msra.mxu0 0.0
  %2117 = vmatprep.subr.mxu0 0.0
  %2118 = vmatpush2.msra.mxu0 0.0
  %2119 = vmatprep.mubr.f32.mxu0 0.0
  %2120 = vmatmul.mubr.f32.gmra.mxu0 %v2053
  %v2121 = vpop.f32.mrf.mxu0
  %v2122 = vpop.f32.mrf.mxu0
  %v2123 = vadd.f32 0.0, %v2122
  %2124 = vdwg.mxu0
  %v2125 = vadd.f32 %v2123, %v2026
  %v2126 = vtanh.pop %v2125
  %v2127 = vmul.f32 %v2126, %v69
  %v2128 = vadd.f32 %v2127, %v76
  %v2129 = vmul.f32 %v2128, %v1947
  %2131 = vrot.lane.b32.xlu0 %v2128, 32
  %v2132 = vpop.permute.xlu0 %2131
  %v2134 = vmul.f32 %v2128, %v2132
  %2136 = vrot.lane.b32.xlu0 %v2134, 32
  %v2137 = vpop.permute.xlu0 %2136
  %v2139 = vadd.f32 %v2129, %v2137
  %v2140 = vtanh.pop %v2139
  %2142 = vrot.lane.b32.xlu0 %v2140, 32
  %v2143 = vpop.permute.xlu0 %2142
  %v2145 = vmul.f32 %v2128, %v2143
  %v2146 = vld [vmem:[%s8] sm:$0x1]
  %v2148 = vlaneseq
  %v2149 = vshrl.u32 %v2148, 7
  %v2150 = vsub.s32 0, %v2149
  %v2151 = vrot.slane %v2146, %v2150
  %2152 = vrot.lane.b32.xlu0 %v2151, 64
  %v2153 = vpop.permute.xlu0 %2152
  %v2155 = vmul.f32 %v2145, %v2153
  %2157 = vrot.lane.b32.xlu0 %v2155, 64
  %v2158 = vpop.permute.xlu0 %2157
  %v2160 = vsel %vm699, %v2158, 0.0
  %2161 = vadd.xlane.f32.xlu0 %v2160
  %v2162 = vpop.xlane.xlu0 %2161
  %v2163 = vld [vmem:[#allocation2] sm:$0x1]
  %v2165 = vlaneseq
  %v2166 = vshrl.u32 %v2165, 7
  %v2167 = vsub.s32 0, %v2166
  %v2168 = vrot.slane %v2163, %v2167
  %v2170 = vadd.f32 %v2162, %v2168
  %vm2171 = vcmask 7168
  %2172 = vst.msk [vmem:[%s10] sm:$0xff] %vm2171, %v2170
  // Predicated region
  $region42: #{tpu_custom_call.1} parent=0 // pred_check
    _
  $region43: #{tpu_custom_call.1} parent=0 // pred_check_branch
    %2174 = sbr.rel (0) target = $region45
  $region44: #{tpu_custom_call.1} parent=0 // pred_region
    _
  $region45: #{tpu_custom_call.1} parent=0 // pred_fallthru
    _
  // Predicated region
  $region46: #{tpu_custom_call.1} parent=0 // pred_check
    _
  $region47: #{tpu_custom_call.1} parent=0 // pred_check_branch
    %2176 = sbr.rel (0) target = $region49
  $region48: #{tpu_custom_call.1} parent=0 // pred_region
    _
  $region49: #{tpu_custom_call.1} parent=0 // pred_fallthru
    _

</llo_original>
